<compile_context>
chip_gen: v7x
topology: tpu7x:2x2x1
jax: 0.10.0
libtpu: 0.0.40
codegen_flags: <defaults>
</compile_context>

<pallas_src>
import functools

import jax
import jax.numpy as jnp
from jax.experimental import pallas as pl
from jax.experimental.pallas import tpu as pltpu

IN_DIM = 6
OUT_DIM = 1
HIDDEN = [128, 256, 512, 256, 64]
BASE_DIMS = [IN_DIM] + HIDDEN + [OUT_DIM]            # [6, 128, 256, 512, 256, 64, 1]
ADPT_DIMS = [IN_DIM + OUT_DIM] + HIDDEN + [OUT_DIM]  # [7, 128, 256, 512, 256, 64, 1]
N_LAYERS = len(BASE_DIMS) - 1                        # 6 Linear layers per MLP


def _round_up(n, m):
    return ((n + m - 1) // m) * m


def adapter_kernel(
    x_ref,
    # base model: 5 hidden (w, b) pairs, then head row weight + SMEM scalar bias
    bw0, bb0, bw1, bb1, bw2, bb2, bw3, bb3, bw4, bb4, bw5r, bb5,
    # adapter MLP: first layer split into x-part / y-part, 4 hidden pairs, head
    aw0x, aw0y, ab0, aw1, ab1, aw2, ab2, aw3, ab3, aw4, ab4, aw5r, ab5,
    out_ref,
):
    f32 = jnp.float32
    x = x_ref[...]                                           # (TB, IN_DIM)

    # ---------------- base model (MyModel) ----------------
    h = x
    for w_ref, b_ref in ((bw0, bb0), (bw1, bb1), (bw2, bb2), (bw3, bb3), (bw4, bb4)):
        h = jnp.maximum(
            jnp.dot(h, w_ref[...], preferred_element_type=f32) + b_ref[...], 0.0)
    # head 64 -> 1: N=1 matmul replaced with VPU broadcast-mul + lane reduction
    y = jnp.sum(h * bw5r[...], axis=-1, keepdims=True) + bb5[0]      # (TB, 1)

    # ---------------- adapter MLP on hstack([x, y]) ----------------
    # Concat is folded away: [x, y] @ W0 == x @ W0[:in_dim] + y * W0[in_dim:]
    h = jnp.maximum(
        jnp.dot(x, aw0x[...], preferred_element_type=f32)
        + y * aw0y[...] + ab0[...], 0.0)
    for w_ref, b_ref in ((aw1, ab1), (aw2, ab2), (aw3, ab3), (aw4, ab4)):
        h = jnp.maximum(
            jnp.dot(h, w_ref[...], preferred_element_type=f32) + b_ref[...], 0.0)
    # adapter head 64 -> 1 (no ReLU)
    out_ref[...] = jnp.sum(h * aw5r[...], axis=-1, keepdims=True) + ab5[0]


def adapter_forward(x, base_w, base_b, adpt_w, adpt_b, *, max_batch_tile=256):
    """Pallas forward for Adapter.  Weights are (fan_in, fan_out), biases (1, fan_out)."""
    B, in_dim = x.shape
    assert in_dim == IN_DIM

    # Batch tile: at least one sublane group (8), MXU-sized (256) for large batches.
    tb = min(max_batch_tile, _round_up(max(B, 1), 8))
    Bp = _round_up(B, tb)
    xp = jnp.pad(x, ((0, Bp - B), (0, 0))) if Bp != B else x

    # Wrapper-side re-layout (cheap, once per call):
    bw5r = base_w[N_LAYERS - 1].reshape(1, BASE_DIMS[N_LAYERS - 1])   # (1, 64)
    bb5s = base_b[N_LAYERS - 1].reshape(1)                            # (1,) -> SMEM
    aw0x = adpt_w[0][:in_dim, :]                                      # (in_dim, 128)
    aw0y = adpt_w[0][in_dim:, :]                                      # (1, 128)
    aw5r = adpt_w[N_LAYERS - 1].reshape(1, ADPT_DIMS[N_LAYERS - 1])   # (1, 64)
    ab5s = adpt_b[N_LAYERS - 1].reshape(1)                            # (1,) -> SMEM

    def resident(a):
        # Full-array block with a constant block index -> DMA'd once, stays in VMEM.
        return pl.BlockSpec(a.shape, lambda i: (0, 0))

    smem_spec = pl.BlockSpec(memory_space=pltpu.MemorySpace.SMEM)

    args = [xp]
    in_specs = [pl.BlockSpec((tb, IN_DIM), lambda i: (i, 0))]

    for i in range(N_LAYERS - 1):                     # base hidden layers 0..4
        args += [base_w[i], base_b[i]]
        in_specs += [resident(base_w[i]), resident(base_b[i])]
    args += [bw5r, bb5s]                              # base head
    in_specs += [resident(bw5r), smem_spec]

    args += [aw0x, aw0y, adpt_b[0]]                   # adapter layer 0 (split concat)
    in_specs += [resident(aw0x), resident(aw0y), resident(adpt_b[0])]
    for i in range(1, N_LAYERS - 1):                  # adapter hidden layers 1..4
        args += [adpt_w[i], adpt_b[i]]
        in_specs += [resident(adpt_w[i]), resident(adpt_b[i])]
    args += [aw5r, ab5s]                              # adapter head
    in_specs += [resident(aw5r), smem_spec]

    out = pl.pallas_call(
        adapter_kernel,
        out_shape=jax.ShapeDtypeStruct((Bp, OUT_DIM), jnp.float32),
        grid=(Bp // tb,),
        in_specs=in_specs,
        out_specs=pl.BlockSpec((tb, OUT_DIM), lambda i: (i, 0)),
        compiler_params=pltpu.CompilerParams(
            dimension_semantics=("parallel",)),       # v7x: shard batch over 2 TCs
    )(*args)
    return out[:B]


def init_params(key):
    """Deterministic init mimicking PyTorch Linear's U(-1/sqrt(fan_in), +1/sqrt(fan_in))."""
    # TODO(synk): PyTorch module uses float64; TPU has no f64 MXU, so params are f32.
    def init_mlp(key, dims):
        ws, bs = [], []
        for i in range(len(dims) - 1):
            fan_in, fan_out = dims[i], dims[i + 1]
            key, kw, kb = jax.random.split(key, 3)
            bound = 1.0 / (fan_in ** 0.5)
            ws.append(jax.random.uniform(kw, (fan_in, fan_out), jnp.float32, -bound, bound))
            bs.append(jax.random.uniform(kb, (1, fan_out), jnp.float32, -bound, bound))
        return key, ws, bs

    key, base_w, base_b = init_mlp(key, BASE_DIMS)
    key, adpt_w, adpt_b = init_mlp(key, ADPT_DIMS)
    return base_w, base_b, adpt_w, adpt_b


def reference(x, base_w, base_b, adpt_w, adpt_b):
    """Pure-JAX f32 reference mirroring Adapter.forward."""
    h = x
    for i in range(N_LAYERS):
        h = h @ base_w[i] + base_b[i]
        if i < N_LAYERS - 1:
            h = jnp.maximum(h, 0.0)
    y = h                                             # base model output (B, 1)
    h = jnp.concatenate([x, y], axis=-1)              # torch.hstack([x, y])
    for i in range(N_LAYERS):
        h = h @ adpt_w[i] + adpt_b[i]
        if i < N_LAYERS - 1:
            h = jnp.maximum(h, 0.0)
    return h


if __name__ == "__main__":
    key = jax.random.PRNGKey(0)
    key, kx = jax.random.split(key)
    B = 8
    x = jax.random.normal(kx, (B, IN_DIM), jnp.float32)
    base_w, base_b, adpt_w, adpt_b = init_params(key)

    out = adapter_forward(x, base_w, base_b, adpt_w, adpt_b)
    jax.block_until_ready(out)

    out_ref = reference(x, base_w, base_b, adpt_w, adpt_b)
    assert out.shape == (B, OUT_DIM)
    assert jnp.allclose(out, out_ref, atol=1e-4, rtol=1e-4), float(
        jnp.max(jnp.abs(out - out_ref)))
    print("KERNEL_OK")
</pallas_src>

<mosaic_0001>
module attributes {stable_mosaic.version = 11 : i64} {
  func.func @adapter_kernel(%arg0: i32, %arg1: memref<8x6xf32, #tpu.memory_space<vmem>>, %arg2: memref<6x128xf32, #tpu.memory_space<vmem>>, %arg3: memref<1x128xf32, #tpu.memory_space<vmem>>, %arg4: memref<128x256xf32, #tpu.memory_space<vmem>>, %arg5: memref<1x256xf32, #tpu.memory_space<vmem>>, %arg6: memref<256x512xf32, #tpu.memory_space<vmem>>, %arg7: memref<1x512xf32, #tpu.memory_space<vmem>>, %arg8: memref<512x256xf32, #tpu.memory_space<vmem>>, %arg9: memref<1x256xf32, #tpu.memory_space<vmem>>, %arg10: memref<256x64xf32, #tpu.memory_space<vmem>>, %arg11: memref<1x64xf32, #tpu.memory_space<vmem>>, %arg12: memref<1x64xf32, #tpu.memory_space<vmem>>, %arg13: memref<1xf32, #tpu.memory_space<smem>>, %arg14: memref<6x128xf32, #tpu.memory_space<vmem>>, %arg15: memref<1x128xf32, #tpu.memory_space<vmem>>, %arg16: memref<1x128xf32, #tpu.memory_space<vmem>>, %arg17: memref<128x256xf32, #tpu.memory_space<vmem>>, %arg18: memref<1x256xf32, #tpu.memory_space<vmem>>, %arg19: memref<256x512xf32, #tpu.memory_space<vmem>>, %arg20: memref<1x512xf32, #tpu.memory_space<vmem>>, %arg21: memref<512x256xf32, #tpu.memory_space<vmem>>, %arg22: memref<1x256xf32, #tpu.memory_space<vmem>>, %arg23: memref<256x64xf32, #tpu.memory_space<vmem>>, %arg24: memref<1x64xf32, #tpu.memory_space<vmem>>, %arg25: memref<1x64xf32, #tpu.memory_space<vmem>>, %arg26: memref<1xf32, #tpu.memory_space<smem>>, %arg27: memref<8x1xf32, #tpu.memory_space<vmem>>) attributes {dimension_semantics = [#tpu.dimension_semantics<parallel>], iteration_bounds = array<i64: 1>, scalar_prefetch = 0 : i64, scratch_operands = 0 : i64, tpu.core_type = #tpu.core_type<tc>, window_params = [{transform_indices = @transform_0, window_bounds = array<i64: 8, 6>}, {pipeline_mode = #tpu.pipeline_mode<synchronous>, transform_indices = @transform_1, window_bounds = array<i64: 6, 128>}, {pipeline_mode = #tpu.pipeline_mode<synchronous>, transform_indices = @transform_2, window_bounds = array<i64: 1, 128>}, {pipeline_mode = #tpu.pipeline_mode<synchronous>, transform_indices = @transform_3, window_bounds = array<i64: 128, 256>}, {pipeline_mode = #tpu.pipeline_mode<synchronous>, transform_indices = @transform_4, window_bounds = array<i64: 1, 256>}, {pipeline_mode = #tpu.pipeline_mode<synchronous>, transform_indices = @transform_5, window_bounds = array<i64: 256, 512>}, {pipeline_mode = #tpu.pipeline_mode<synchronous>, transform_indices = @transform_6, window_bounds = array<i64: 1, 512>}, {pipeline_mode = #tpu.pipeline_mode<synchronous>, transform_indices = @transform_7, window_bounds = array<i64: 512, 256>}, {pipeline_mode = #tpu.pipeline_mode<synchronous>, transform_indices = @transform_8, window_bounds = array<i64: 1, 256>}, {pipeline_mode = #tpu.pipeline_mode<synchronous>, transform_indices = @transform_9, window_bounds = array<i64: 256, 64>}, {pipeline_mode = #tpu.pipeline_mode<synchronous>, transform_indices = @transform_10, window_bounds = array<i64: 1, 64>}, {pipeline_mode = #tpu.pipeline_mode<synchronous>, transform_indices = @transform_11, window_bounds = array<i64: 1, 64>}, {transform_indices = @transform_12, window_bounds = array<i64: 1>}, {pipeline_mode = #tpu.pipeline_mode<synchronous>, transform_indices = @transform_13, window_bounds = array<i64: 6, 128>}, {pipeline_mode = #tpu.pipeline_mode<synchronous>, transform_indices = @transform_14, window_bounds = array<i64: 1, 128>}, {pipeline_mode = #tpu.pipeline_mode<synchronous>, transform_indices = @transform_15, window_bounds = array<i64: 1, 128>}, {pipeline_mode = #tpu.pipeline_mode<synchronous>, transform_indices = @transform_16, window_bounds = array<i64: 128, 256>}, {pipeline_mode = #tpu.pipeline_mode<synchronous>, transform_indices = @transform_17, window_bounds = array<i64: 1, 256>}, {pipeline_mode = #tpu.pipeline_mode<synchronous>, transform_indices = @transform_18, window_bounds = array<i64: 256, 512>}, {pipeline_mode = #tpu.pipeline_mode<synchronous>, transform_indices = @transform_19, window_bounds = array<i64: 1, 512>}, {pipeline_mode = #tpu.pipeline_mode<synchronous>, transform_indices = @transform_20, window_bounds = array<i64: 512, 256>}, {pipeline_mode = #tpu.pipeline_mode<synchronous>, transform_indices = @transform_21, window_bounds = array<i64: 1, 256>}, {pipeline_mode = #tpu.pipeline_mode<synchronous>, transform_indices = @transform_22, window_bounds = array<i64: 256, 64>}, {pipeline_mode = #tpu.pipeline_mode<synchronous>, transform_indices = @transform_23, window_bounds = array<i64: 1, 64>}, {pipeline_mode = #tpu.pipeline_mode<synchronous>, transform_indices = @transform_24, window_bounds = array<i64: 1, 64>}, {transform_indices = @transform_25, window_bounds = array<i64: 1>}, {transform_indices = @transform_26, window_bounds = array<i64: 8, 1>}]} {
    %c0 = arith.constant 0 : index
    %c0_0 = arith.constant 0 : index
    %0 = vector.load %arg1[%c0, %c0_0] : memref<8x6xf32, #tpu.memory_space<vmem>>, vector<8x6xf32>
    %c0_1 = arith.constant 0 : index
    %c0_2 = arith.constant 0 : index
    %1 = vector.load %arg2[%c0_1, %c0_2] : memref<6x128xf32, #tpu.memory_space<vmem>>, vector<6x128xf32>
    %cst = arith.constant dense<0.000000e+00> : vector<8x128xf32>
    %2 = tpu.matmul %0, %1, %cst {dimension_numbers = #tpu.dot_dimension_numbers<[1], [0], [0], [1], [0, 0, 1, 1], [], []>} : vector<8x6xf32>, vector<6x128xf32>, vector<8x128xf32> -> vector<8x128xf32>
    %c0_3 = arith.constant 0 : index
    %c0_4 = arith.constant 0 : index
    %3 = vector.load %arg3[%c0_3, %c0_4] : memref<1x128xf32, #tpu.memory_space<vmem>>, vector<1x128xf32>
    %4 = vector.broadcast %3 : vector<1x128xf32> to vector<8x128xf32>
    %5 = arith.addf %2, %4 : vector<8x128xf32>
    %cst_5 = arith.constant 0.000000e+00 : f32
    %6 = vector.broadcast %cst_5 : f32 to vector<8x128xf32>
    %7 = arith.maximumf %5, %6 : vector<8x128xf32>
    %c0_6 = arith.constant 0 : index
    %c0_7 = arith.constant 0 : index
    %8 = vector.load %arg4[%c0_6, %c0_7] : memref<128x256xf32, #tpu.memory_space<vmem>>, vector<128x256xf32>
    %cst_8 = arith.constant dense<0.000000e+00> : vector<8x256xf32>
    %9 = tpu.matmul %7, %8, %cst_8 {dimension_numbers = #tpu.dot_dimension_numbers<[1], [0], [0], [1], [0, 0, 1, 1], [], []>} : vector<8x128xf32>, vector<128x256xf32>, vector<8x256xf32> -> vector<8x256xf32>
    %c0_9 = arith.constant 0 : index
    %c0_10 = arith.constant 0 : index
    %10 = vector.load %arg5[%c0_9, %c0_10] : memref<1x256xf32, #tpu.memory_space<vmem>>, vector<1x256xf32>
    %11 = vector.broadcast %10 : vector<1x256xf32> to vector<8x256xf32>
    %12 = arith.addf %9, %11 : vector<8x256xf32>
    %cst_11 = arith.constant 0.000000e+00 : f32
    %13 = vector.broadcast %cst_11 : f32 to vector<8x256xf32>
    %14 = arith.maximumf %12, %13 : vector<8x256xf32>
    %c0_12 = arith.constant 0 : index
    %c0_13 = arith.constant 0 : index
    %15 = vector.load %arg6[%c0_12, %c0_13] : memref<256x512xf32, #tpu.memory_space<vmem>>, vector<256x512xf32>
    %cst_14 = arith.constant dense<0.000000e+00> : vector<8x512xf32>
    %16 = tpu.matmul %14, %15, %cst_14 {dimension_numbers = #tpu.dot_dimension_numbers<[1], [0], [0], [1], [0, 0, 1, 1], [], []>} : vector<8x256xf32>, vector<256x512xf32>, vector<8x512xf32> -> vector<8x512xf32>
    %c0_15 = arith.constant 0 : index
    %c0_16 = arith.constant 0 : index
    %17 = vector.load %arg7[%c0_15, %c0_16] : memref<1x512xf32, #tpu.memory_space<vmem>>, vector<1x512xf32>
    %18 = vector.broadcast %17 : vector<1x512xf32> to vector<8x512xf32>
    %19 = arith.addf %16, %18 : vector<8x512xf32>
    %cst_17 = arith.constant 0.000000e+00 : f32
    %20 = vector.broadcast %cst_17 : f32 to vector<8x512xf32>
    %21 = arith.maximumf %19, %20 : vector<8x512xf32>
    %c0_18 = arith.constant 0 : index
    %c0_19 = arith.constant 0 : index
    %22 = vector.load %arg8[%c0_18, %c0_19] : memref<512x256xf32, #tpu.memory_space<vmem>>, vector<512x256xf32>
    %cst_20 = arith.constant dense<0.000000e+00> : vector<8x256xf32>
    %23 = tpu.matmul %21, %22, %cst_20 {dimension_numbers = #tpu.dot_dimension_numbers<[1], [0], [0], [1], [0, 0, 1, 1], [], []>} : vector<8x512xf32>, vector<512x256xf32>, vector<8x256xf32> -> vector<8x256xf32>
    %c0_21 = arith.constant 0 : index
    %c0_22 = arith.constant 0 : index
    %24 = vector.load %arg9[%c0_21, %c0_22] : memref<1x256xf32, #tpu.memory_space<vmem>>, vector<1x256xf32>
    %25 = vector.broadcast %24 : vector<1x256xf32> to vector<8x256xf32>
    %26 = arith.addf %23, %25 : vector<8x256xf32>
    %cst_23 = arith.constant 0.000000e+00 : f32
    %27 = vector.broadcast %cst_23 : f32 to vector<8x256xf32>
    %28 = arith.maximumf %26, %27 : vector<8x256xf32>
    %c0_24 = arith.constant 0 : index
    %c0_25 = arith.constant 0 : index
    %29 = vector.load %arg10[%c0_24, %c0_25] : memref<256x64xf32, #tpu.memory_space<vmem>>, vector<256x64xf32>
    %cst_26 = arith.constant dense<0.000000e+00> : vector<8x64xf32>
    %30 = tpu.matmul %28, %29, %cst_26 {dimension_numbers = #tpu.dot_dimension_numbers<[1], [0], [0], [1], [0, 0, 1, 1], [], []>} : vector<8x256xf32>, vector<256x64xf32>, vector<8x64xf32> -> vector<8x64xf32>
    %c0_27 = arith.constant 0 : index
    %c0_28 = arith.constant 0 : index
    %31 = vector.load %arg11[%c0_27, %c0_28] : memref<1x64xf32, #tpu.memory_space<vmem>>, vector<1x64xf32>
    %32 = vector.broadcast %31 : vector<1x64xf32> to vector<8x64xf32>
    %33 = arith.addf %30, %32 : vector<8x64xf32>
    %cst_29 = arith.constant 0.000000e+00 : f32
    %34 = vector.broadcast %cst_29 : f32 to vector<8x64xf32>
    %35 = arith.maximumf %33, %34 : vector<8x64xf32>
    %c0_30 = arith.constant 0 : index
    %c0_31 = arith.constant 0 : index
    %36 = vector.load %arg12[%c0_30, %c0_31] : memref<1x64xf32, #tpu.memory_space<vmem>>, vector<1x64xf32>
    %37 = vector.broadcast %36 : vector<1x64xf32> to vector<8x64xf32>
    %38 = arith.mulf %35, %37 : vector<8x64xf32>
    %cst_32 = arith.constant dense<0.000000e+00> : vector<8xf32>
    %39 = vector.multi_reduction <add>, %38, %cst_32 [1] : vector<8x64xf32> to vector<8xf32>
    %40 = vector.shape_cast %39 : vector<8xf32> to vector<8x1xf32>
    %c0_33 = arith.constant 0 : index
    %41 = memref.load %arg13[%c0_33] : memref<1xf32, #tpu.memory_space<smem>>
    %42 = vector.broadcast %41 : f32 to vector<8x1xf32>
    %43 = arith.addf %40, %42 : vector<8x1xf32>
    %c0_34 = arith.constant 0 : index
    %c0_35 = arith.constant 0 : index
    %44 = vector.load %arg14[%c0_34, %c0_35] : memref<6x128xf32, #tpu.memory_space<vmem>>, vector<6x128xf32>
    %cst_36 = arith.constant dense<0.000000e+00> : vector<8x128xf32>
    %45 = tpu.matmul %0, %44, %cst_36 {dimension_numbers = #tpu.dot_dimension_numbers<[1], [0], [0], [1], [0, 0, 1, 1], [], []>} : vector<8x6xf32>, vector<6x128xf32>, vector<8x128xf32> -> vector<8x128xf32>
    %c0_37 = arith.constant 0 : index
    %c0_38 = arith.constant 0 : index
    %46 = vector.load %arg15[%c0_37, %c0_38] : memref<1x128xf32, #tpu.memory_space<vmem>>, vector<1x128xf32>
    %47 = vector.broadcast %43 : vector<8x1xf32> to vector<8x128xf32>
    %48 = vector.broadcast %46 : vector<1x128xf32> to vector<8x128xf32>
    %49 = arith.mulf %47, %48 : vector<8x128xf32>
    %50 = arith.addf %45, %49 : vector<8x128xf32>
    %c0_39 = arith.constant 0 : index
    %c0_40 = arith.constant 0 : index
    %51 = vector.load %arg16[%c0_39, %c0_40] : memref<1x128xf32, #tpu.memory_space<vmem>>, vector<1x128xf32>
    %52 = vector.broadcast %51 : vector<1x128xf32> to vector<8x128xf32>
    %53 = arith.addf %50, %52 : vector<8x128xf32>
    %cst_41 = arith.constant 0.000000e+00 : f32
    %54 = vector.broadcast %cst_41 : f32 to vector<8x128xf32>
    %55 = arith.maximumf %53, %54 : vector<8x128xf32>
    %c0_42 = arith.constant 0 : index
    %c0_43 = arith.constant 0 : index
    %56 = vector.load %arg17[%c0_42, %c0_43] : memref<128x256xf32, #tpu.memory_space<vmem>>, vector<128x256xf32>
    %cst_44 = arith.constant dense<0.000000e+00> : vector<8x256xf32>
    %57 = tpu.matmul %55, %56, %cst_44 {dimension_numbers = #tpu.dot_dimension_numbers<[1], [0], [0], [1], [0, 0, 1, 1], [], []>} : vector<8x128xf32>, vector<128x256xf32>, vector<8x256xf32> -> vector<8x256xf32>
    %c0_45 = arith.constant 0 : index
    %c0_46 = arith.constant 0 : index
    %58 = vector.load %arg18[%c0_45, %c0_46] : memref<1x256xf32, #tpu.memory_space<vmem>>, vector<1x256xf32>
    %59 = vector.broadcast %58 : vector<1x256xf32> to vector<8x256xf32>
    %60 = arith.addf %57, %59 : vector<8x256xf32>
    %cst_47 = arith.constant 0.000000e+00 : f32
    %61 = vector.broadcast %cst_47 : f32 to vector<8x256xf32>
    %62 = arith.maximumf %60, %61 : vector<8x256xf32>
    %c0_48 = arith.constant 0 : index
    %c0_49 = arith.constant 0 : index
    %63 = vector.load %arg19[%c0_48, %c0_49] : memref<256x512xf32, #tpu.memory_space<vmem>>, vector<256x512xf32>
    %cst_50 = arith.constant dense<0.000000e+00> : vector<8x512xf32>
    %64 = tpu.matmul %62, %63, %cst_50 {dimension_numbers = #tpu.dot_dimension_numbers<[1], [0], [0], [1], [0, 0, 1, 1], [], []>} : vector<8x256xf32>, vector<256x512xf32>, vector<8x512xf32> -> vector<8x512xf32>
    %c0_51 = arith.constant 0 : index
    %c0_52 = arith.constant 0 : index
    %65 = vector.load %arg20[%c0_51, %c0_52] : memref<1x512xf32, #tpu.memory_space<vmem>>, vector<1x512xf32>
    %66 = vector.broadcast %65 : vector<1x512xf32> to vector<8x512xf32>
    %67 = arith.addf %64, %66 : vector<8x512xf32>
    %cst_53 = arith.constant 0.000000e+00 : f32
    %68 = vector.broadcast %cst_53 : f32 to vector<8x512xf32>
    %69 = arith.maximumf %67, %68 : vector<8x512xf32>
    %c0_54 = arith.constant 0 : index
    %c0_55 = arith.constant 0 : index
    %70 = vector.load %arg21[%c0_54, %c0_55] : memref<512x256xf32, #tpu.memory_space<vmem>>, vector<512x256xf32>
    %cst_56 = arith.constant dense<0.000000e+00> : vector<8x256xf32>
    %71 = tpu.matmul %69, %70, %cst_56 {dimension_numbers = #tpu.dot_dimension_numbers<[1], [0], [0], [1], [0, 0, 1, 1], [], []>} : vector<8x512xf32>, vector<512x256xf32>, vector<8x256xf32> -> vector<8x256xf32>
    %c0_57 = arith.constant 0 : index
    %c0_58 = arith.constant 0 : index
    %72 = vector.load %arg22[%c0_57, %c0_58] : memref<1x256xf32, #tpu.memory_space<vmem>>, vector<1x256xf32>
    %73 = vector.broadcast %72 : vector<1x256xf32> to vector<8x256xf32>
    %74 = arith.addf %71, %73 : vector<8x256xf32>
    %cst_59 = arith.constant 0.000000e+00 : f32
    %75 = vector.broadcast %cst_59 : f32 to vector<8x256xf32>
    %76 = arith.maximumf %74, %75 : vector<8x256xf32>
    %c0_60 = arith.constant 0 : index
    %c0_61 = arith.constant 0 : index
    %77 = vector.load %arg23[%c0_60, %c0_61] : memref<256x64xf32, #tpu.memory_space<vmem>>, vector<256x64xf32>
    %cst_62 = arith.constant dense<0.000000e+00> : vector<8x64xf32>
    %78 = tpu.matmul %76, %77, %cst_62 {dimension_numbers = #tpu.dot_dimension_numbers<[1], [0], [0], [1], [0, 0, 1, 1], [], []>} : vector<8x256xf32>, vector<256x64xf32>, vector<8x64xf32> -> vector<8x64xf32>
    %c0_63 = arith.constant 0 : index
    %c0_64 = arith.constant 0 : index
    %79 = vector.load %arg24[%c0_63, %c0_64] : memref<1x64xf32, #tpu.memory_space<vmem>>, vector<1x64xf32>
    %80 = vector.broadcast %79 : vector<1x64xf32> to vector<8x64xf32>
    %81 = arith.addf %78, %80 : vector<8x64xf32>
    %cst_65 = arith.constant 0.000000e+00 : f32
    %82 = vector.broadcast %cst_65 : f32 to vector<8x64xf32>
    %83 = arith.maximumf %81, %82 : vector<8x64xf32>
    %c0_66 = arith.constant 0 : index
    %c0_67 = arith.constant 0 : index
    %84 = vector.load %arg25[%c0_66, %c0_67] : memref<1x64xf32, #tpu.memory_space<vmem>>, vector<1x64xf32>
    %85 = vector.broadcast %84 : vector<1x64xf32> to vector<8x64xf32>
    %86 = arith.mulf %83, %85 : vector<8x64xf32>
    %cst_68 = arith.constant dense<0.000000e+00> : vector<8xf32>
    %87 = vector.multi_reduction <add>, %86, %cst_68 [1] : vector<8x64xf32> to vector<8xf32>
    %88 = vector.shape_cast %87 : vector<8xf32> to vector<8x1xf32>
    %c0_69 = arith.constant 0 : index
    %89 = memref.load %arg26[%c0_69] : memref<1xf32, #tpu.memory_space<smem>>
    %90 = vector.broadcast %89 : f32 to vector<8x1xf32>
    %91 = arith.addf %88, %90 : vector<8x1xf32>
    %c0_70 = arith.constant 0 : index
    %c0_71 = arith.constant 0 : index
    %92 = vector.load %arg27[%c0_70, %c0_71] : memref<8x1xf32, #tpu.memory_space<vmem>>, vector<8x1xf32>
    tpu.vector_store %arg27[%c0_70, %c0_71], %91 {strides = array<i32>} : memref<8x1xf32, #tpu.memory_space<vmem>>, vector<8x1xf32>,
    return
  }
  func.func @transform_0(%arg0: i32) -> (i32, i32) {
    %c0_i32 = arith.constant 0 : i32
    %c0_i32_0 = arith.constant 0 : i32
    return %arg0, %c0_i32 : i32, i32
  }
  func.func @transform_1(%arg0: i32) -> (i32, i32) {
    %c0_i32 = arith.constant 0 : i32
    %c0_i32_0 = arith.constant 0 : i32
    %c0_i32_1 = arith.constant 0 : i32
    return %c0_i32, %c0_i32_0 : i32, i32
  }
  func.func @transform_2(%arg0: i32) -> (i32, i32) {
    %c0_i32 = arith.constant 0 : i32
    %c0_i32_0 = arith.constant 0 : i32
    %c0_i32_1 = arith.constant 0 : i32
    return %c0_i32, %c0_i32_0 : i32, i32
  }
  func.func @transform_3(%arg0: i32) -> (i32, i32) {
    %c0_i32 = arith.constant 0 : i32
    %c0_i32_0 = arith.constant 0 : i32
    %c0_i32_1 = arith.constant 0 : i32
    return %c0_i32, %c0_i32_0 : i32, i32
  }
  func.func @transform_4(%arg0: i32) -> (i32, i32) {
    %c0_i32 = arith.constant 0 : i32
    %c0_i32_0 = arith.constant 0 : i32
    %c0_i32_1 = arith.constant 0 : i32
    return %c0_i32, %c0_i32_0 : i32, i32
  }
  func.func @transform_5(%arg0: i32) -> (i32, i32) {
    %c0_i32 = arith.constant 0 : i32
    %c0_i32_0 = arith.constant 0 : i32
    %c0_i32_1 = arith.constant 0 : i32
    return %c0_i32, %c0_i32_0 : i32, i32
  }
  func.func @transform_6(%arg0: i32) -> (i32, i32) {
    %c0_i32 = arith.constant 0 : i32
    %c0_i32_0 = arith.constant 0 : i32
    %c0_i32_1 = arith.constant 0 : i32
    return %c0_i32, %c0_i32_0 : i32, i32
  }
  func.func @transform_7(%arg0: i32) -> (i32, i32) {
    %c0_i32 = arith.constant 0 : i32
    %c0_i32_0 = arith.constant 0 : i32
    %c0_i32_1 = arith.constant 0 : i32
    return %c0_i32, %c0_i32_0 : i32, i32
  }
  func.func @transform_8(%arg0: i32) -> (i32, i32) {
    %c0_i32 = arith.constant 0 : i32
    %c0_i32_0 = arith.constant 0 : i32
    %c0_i32_1 = arith.constant 0 : i32
    return %c0_i32, %c0_i32_0 : i32, i32
  }
  func.func @transform_9(%arg0: i32) -> (i32, i32) {
    %c0_i32 = arith.constant 0 : i32
    %c0_i32_0 = arith.constant 0 : i32
    %c0_i32_1 = arith.constant 0 : i32
    return %c0_i32, %c0_i32_0 : i32, i32
  }
  func.func @transform_10(%arg0: i32) -> (i32, i32) {
    %c0_i32 = arith.constant 0 : i32
    %c0_i32_0 = arith.constant 0 : i32
    %c0_i32_1 = arith.constant 0 : i32
    return %c0_i32, %c0_i32_0 : i32, i32
  }
  func.func @transform_11(%arg0: i32) -> (i32, i32) {
    %c0_i32 = arith.constant 0 : i32
    %c0_i32_0 = arith.constant 0 : i32
    %c0_i32_1 = arith.constant 0 : i32
    return %c0_i32, %c0_i32_0 : i32, i32
  }
  func.func @transform_12(%arg0: i32) -> i32 {
    %c0_i32 = arith.constant 0 : i32
    %c0_i32_0 = arith.constant 0 : i32
    return %c0_i32 : i32
  }
  func.func @transform_13(%arg0: i32) -> (i32, i32) {
    %c0_i32 = arith.constant 0 : i32
    %c0_i32_0 = arith.constant 0 : i32
    %c0_i32_1 = arith.constant 0 : i32
    return %c0_i32, %c0_i32_0 : i32, i32
  }
  func.func @transform_14(%arg0: i32) -> (i32, i32) {
    %c0_i32 = arith.constant 0 : i32
    %c0_i32_0 = arith.constant 0 : i32
    %c0_i32_1 = arith.constant 0 : i32
    return %c0_i32, %c0_i32_0 : i32, i32
  }
  func.func @transform_15(%arg0: i32) -> (i32, i32) {
    %c0_i32 = arith.constant 0 : i32
    %c0_i32_0 = arith.constant 0 : i32
    %c0_i32_1 = arith.constant 0 : i32
    return %c0_i32, %c0_i32_0 : i32, i32
  }
  func.func @transform_16(%arg0: i32) -> (i32, i32) {
    %c0_i32 = arith.constant 0 : i32
    %c0_i32_0 = arith.constant 0 : i32
    %c0_i32_1 = arith.constant 0 : i32
    return %c0_i32, %c0_i32_0 : i32, i32
  }
  func.func @transform_17(%arg0: i32) -> (i32, i32) {
    %c0_i32 = arith.constant 0 : i32
    %c0_i32_0 = arith.constant 0 : i32
    %c0_i32_1 = arith.constant 0 : i32
    return %c0_i32, %c0_i32_0 : i32, i32
  }
  func.func @transform_18(%arg0: i32) -> (i32, i32) {
    %c0_i32 = arith.constant 0 : i32
    %c0_i32_0 = arith.constant 0 : i32
    %c0_i32_1 = arith.constant 0 : i32
    return %c0_i32, %c0_i32_0 : i32, i32
  }
  func.func @transform_19(%arg0: i32) -> (i32, i32) {
    %c0_i32 = arith.constant 0 : i32
    %c0_i32_0 = arith.constant 0 : i32
    %c0_i32_1 = arith.constant 0 : i32
    return %c0_i32, %c0_i32_0 : i32, i32
  }
  func.func @transform_20(%arg0: i32) -> (i32, i32) {
    %c0_i32 = arith.constant 0 : i32
    %c0_i32_0 = arith.constant 0 : i32
    %c0_i32_1 = arith.constant 0 : i32
    return %c0_i32, %c0_i32_0 : i32, i32
  }
  func.func @transform_21(%arg0: i32) -> (i32, i32) {
    %c0_i32 = arith.constant 0 : i32
    %c0_i32_0 = arith.constant 0 : i32
    %c0_i32_1 = arith.constant 0 : i32
    return %c0_i32, %c0_i32_0 : i32, i32
  }
  func.func @transform_22(%arg0: i32) -> (i32, i32) {
    %c0_i32 = arith.constant 0 : i32
    %c0_i32_0 = arith.constant 0 : i32
    %c0_i32_1 = arith.constant 0 : i32
    return %c0_i32, %c0_i32_0 : i32, i32
  }
  func.func @transform_23(%arg0: i32) -> (i32, i32) {
    %c0_i32 = arith.constant 0 : i32
    %c0_i32_0 = arith.constant 0 : i32
    %c0_i32_1 = arith.constant 0 : i32
    return %c0_i32, %c0_i32_0 : i32, i32
  }
  func.func @transform_24(%arg0: i32) -> (i32, i32) {
    %c0_i32 = arith.constant 0 : i32
    %c0_i32_0 = arith.constant 0 : i32
    %c0_i32_1 = arith.constant 0 : i32
    return %c0_i32, %c0_i32_0 : i32, i32
  }
  func.func @transform_25(%arg0: i32) -> i32 {
    %c0_i32 = arith.constant 0 : i32
    %c0_i32_0 = arith.constant 0 : i32
    return %c0_i32 : i32
  }
  func.func @transform_26(%arg0: i32) -> (i32, i32) {
    %c0_i32 = arith.constant 0 : i32
    %c0_i32_0 = arith.constant 0 : i32
    return %arg0, %c0_i32 : i32, i32
  }
}

</mosaic_0001>

<llo_original>
// kernel: tpu_custom_call.1
$region0: #{tpu_custom_call.1}
  #allocation0 [shape = 'u32[]', space=smem, size = 0x4, offset = 0x4, fixed_abs, tag = 'smem constant byte address 0x4 - core index']
  #allocation1 [shape = 'u32[144,128]{1,0:T(1,128)}', space=vmem, size = 0x12000, scoped, tag = 'internal scratch']
  #allocation2 [shape = 'f32[1]{0:T(128)S(6)}', space=smem, size = 0x200, scoped, tag = 'scoped memory for tpu_custom_call.1']
  #allocation3 [shape = 'f32[1]{0:T(128)S(6)}', space=smem, size = 0x200, scoped, tag = 'scoped memory for tpu_custom_call.1']
  %s0 = inlined_call_operand.vmem [shape: f32[8,6], index: 0, kind: input, shape index: {}]
  %s1 = inlined_call_operand.vmem [shape: f32[6,128], index: 1, kind: input, shape index: {}]
  %s2 = inlined_call_operand.vmem [shape: f32[1,128], index: 2, kind: input, shape index: {}]
  %s3 = inlined_call_operand.vmem [shape: f32[128,256], index: 3, kind: input, shape index: {}]
  %s4 = inlined_call_operand.vmem [shape: f32[1,256], index: 4, kind: input, shape index: {}]
  %s5 = inlined_call_operand.hbm [shape: f32[256,512], index: 5, kind: input, shape index: {}]
  %s6 = inlined_call_operand.vmem [shape: f32[1,512], index: 6, kind: input, shape index: {}]
  %s7 = inlined_call_operand.hbm [shape: f32[512,256], index: 7, kind: input, shape index: {}]
  %s8 = inlined_call_operand.vmem [shape: f32[1,256], index: 8, kind: input, shape index: {}]
  %s9 = inlined_call_operand.vmem [shape: f32[256,64], index: 9, kind: input, shape index: {}]
  %s10 = inlined_call_operand.vmem [shape: f32[1,64], index: 10, kind: input, shape index: {}]
  %s11 = inlined_call_operand.vmem [shape: f32[1,64], index: 11, kind: input, shape index: {}]
  %s12 = inlined_call_operand.<no memory space> [shape: f32[1], index: 12, kind: input, shape index: {}]
  %s13 = inlined_call_operand.vmem [shape: f32[6,128], index: 13, kind: input, shape index: {}]
  %s14 = inlined_call_operand.vmem [shape: f32[1,128], index: 14, kind: input, shape index: {}]
  %s15 = inlined_call_operand.vmem [shape: f32[1,128], index: 15, kind: input, shape index: {}]
  %s16 = inlined_call_operand.vmem [shape: f32[128,256], index: 16, kind: input, shape index: {}]
  %s17 = inlined_call_operand.vmem [shape: f32[1,256], index: 17, kind: input, shape index: {}]
  %s18 = inlined_call_operand.hbm [shape: f32[256,512], index: 18, kind: input, shape index: {}]
  %s19 = inlined_call_operand.vmem [shape: f32[1,512], index: 19, kind: input, shape index: {}]
  %s20 = inlined_call_operand.hbm [shape: f32[512,256], index: 20, kind: input, shape index: {}]
  %s21 = inlined_call_operand.vmem [shape: f32[1,256], index: 21, kind: input, shape index: {}]
  %s22 = inlined_call_operand.vmem [shape: f32[256,64], index: 22, kind: input, shape index: {}]
  %s23 = inlined_call_operand.vmem [shape: f32[1,64], index: 23, kind: input, shape index: {}]
  %s24 = inlined_call_operand.vmem [shape: f32[1,64], index: 24, kind: input, shape index: {}]
  %s25 = inlined_call_operand.<no memory space> [shape: f32[1], index: 25, kind: input, shape index: {}]
  %s26 = inlined_call_operand.vmem [shape: f32[8,1], index: 26, kind: output, shape index: {}]
  %s27 = sld [smem:[#allocation0]]
  $region130: #{tpu_custom_call.1} parent=0
    _
  %s29 = ssub.s32 1, %s27
  %s30 = scalar_select 0, %s29, %s27
  %31 = sst [smem:[#allocation2]] %s12
  %32 = sst [smem:[#allocation3]] %s25
  $region1: #{tpu_custom_call.1} parent=0
    #allocation4 [shape = 'u8[524288]{0}', space=vmem, size = 0x80000, scoped, tag = 'input window, operand 5, single buffered']
    #allocation5 [shape = 's32[1]{0}', space=sflag, size = 0x4, scoped, tag = 'scoped memory for tpu_custom_call.1']
    #allocation6 [shape = 'u8[524288]{0}', space=vmem, size = 0x80000, scoped, tag = 'input window, operand 7, single buffered']
    #allocation7 [shape = 's32[1]{0}', space=sflag, size = 0x4, scoped, tag = 'scoped memory for tpu_custom_call.1']
    #allocation8 [shape = 'u8[524288]{0}', space=vmem, size = 0x80000, scoped, tag = 'input window, operand 18, single buffered']
    #allocation9 [shape = 'u8[524288]{0}', space=vmem, size = 0x80000, scoped, tag = 'input window, operand 20, single buffered']
    #allocation10 [shape = 's32[1]{0}', space=sflag, size = 0x4, scoped, tag = 'scoped memory for tpu_custom_call.1']
    %33 = vsyncpa [#allocation5], 0
    %34 = vsyncpa [#allocation7], 0
    %35 = vsyncpa [#allocation10], 0
    // Predicated region
    $region2: #{tpu_custom_call.1} parent=1 // pred_check
      _
    $region3: #{tpu_custom_call.1} parent=1 // pred_check_branch
      %37 = sbr.rel (0) target = $region5
    $region4: #{tpu_custom_call.1} parent=1 // pred_region
      _
    $region5: #{tpu_custom_call.1} parent=1 // pred_fallthru
      _
    // Predicated region
    $region6: #{tpu_custom_call.1} parent=1 // pred_check
      _
    $region7: #{tpu_custom_call.1} parent=1 // pred_check_branch
      %39 = sbr.rel (0) target = $region9
    $region8: #{tpu_custom_call.1} parent=1 // pred_region
      _
    $region9: #{tpu_custom_call.1} parent=1 // pred_fallthru
      _
    // Predicated region
    $region10: #{tpu_custom_call.1} parent=1 // pred_check
      _
    $region11: #{tpu_custom_call.1} parent=1 // pred_check_branch
      %41 = sbr.rel (0) target = $region13
    $region12: #{tpu_custom_call.1} parent=1 // pred_region
      _
    $region13: #{tpu_custom_call.1} parent=1 // pred_fallthru
      _
    // Predicated region
    $region14: #{tpu_custom_call.1} parent=1 // pred_check
      _
    $region15: #{tpu_custom_call.1} parent=1 // pred_check_branch
      %43 = sbr.rel (0) target = $region17
    $region16: #{tpu_custom_call.1} parent=1 // pred_region
      _
    $region17: #{tpu_custom_call.1} parent=1 // pred_fallthru
      _
    // Predicated region
    $region18: #{tpu_custom_call.1} parent=1 // pred_check
      _
    $region19: #{tpu_custom_call.1} parent=1 // pred_check_branch
      %45 = sbr.rel (0) target = $region21
    $region20: #{tpu_custom_call.1} parent=1 // pred_region
      _
    $region21: #{tpu_custom_call.1} parent=1 // pred_fallthru
      _
    // Predicated region
    $region22: #{tpu_custom_call.1} parent=1 // pred_check
      _
    $region23: #{tpu_custom_call.1} parent=1 // pred_check_branch
      %47 = sbr.rel (0) target = $region25
    $region24: #{tpu_custom_call.1} parent=1 // pred_region
      %s49 = ssub.s32 16384, 16384
      %50 = vsyncadd [#allocation5], %s49
      %s51 = sshll.u32 [#allocation4], 4
      %s52 = int_to_ptr.vmem [resolvable:$true] %s51
      %57 = dma.hbm_to_vmem [thread:$0]  %s5, 16384, %s52, [#allocation5], 512, 512, 32
    $region25: #{tpu_custom_call.1} parent=1 // pred_fallthru
      _
    // Predicated region
    $region26: #{tpu_custom_call.1} parent=1 // pred_check
      _
    $region27: #{tpu_custom_call.1} parent=1 // pred_check_branch
      %59 = sbr.rel (0) target = $region29
    $region28: #{tpu_custom_call.1} parent=1 // pred_region
      _
    $region29: #{tpu_custom_call.1} parent=1 // pred_fallthru
      _
    // Predicated region
    $region30: #{tpu_custom_call.1} parent=1 // pred_check
      _
    $region31: #{tpu_custom_call.1} parent=1 // pred_check_branch
      %61 = sbr.rel (0) target = $region33
    $region32: #{tpu_custom_call.1} parent=1 // pred_region
      %s63 = ssub.s32 16384, 16384
      %64 = vsyncadd [#allocation7], %s63
      %s65 = sshll.u32 [#allocation6], 4
      %s66 = int_to_ptr.vmem [resolvable:$true] %s65
      %71 = dma.hbm_to_vmem [thread:$0]  %s7, 16384, %s66, [#allocation7], 256, 256, 16
    $region33: #{tpu_custom_call.1} parent=1 // pred_fallthru
      _
    // Predicated region
    $region34: #{tpu_custom_call.1} parent=1 // pred_check
      _
    $region35: #{tpu_custom_call.1} parent=1 // pred_check_branch
      %73 = sbr.rel (0) target = $region37
    $region36: #{tpu_custom_call.1} parent=1 // pred_region
      _
    $region37: #{tpu_custom_call.1} parent=1 // pred_fallthru
      _
    // Predicated region
    $region38: #{tpu_custom_call.1} parent=1 // pred_check
      _
    $region39: #{tpu_custom_call.1} parent=1 // pred_check_branch
      %75 = sbr.rel (0) target = $region41
    $region40: #{tpu_custom_call.1} parent=1 // pred_region
      _
    $region41: #{tpu_custom_call.1} parent=1 // pred_fallthru
      _
    // Predicated region
    $region42: #{tpu_custom_call.1} parent=1 // pred_check
      _
    $region43: #{tpu_custom_call.1} parent=1 // pred_check_branch
      %77 = sbr.rel (0) target = $region45
    $region44: #{tpu_custom_call.1} parent=1 // pred_region
      _
    $region45: #{tpu_custom_call.1} parent=1 // pred_fallthru
      _
    // Predicated region
    $region46: #{tpu_custom_call.1} parent=1 // pred_check
      _
    $region47: #{tpu_custom_call.1} parent=1 // pred_check_branch
      %79 = sbr.rel (0) target = $region49
    $region48: #{tpu_custom_call.1} parent=1 // pred_region
      _
    $region49: #{tpu_custom_call.1} parent=1 // pred_fallthru
      _
    // Predicated region
    $region50: #{tpu_custom_call.1} parent=1 // pred_check
      _
    $region51: #{tpu_custom_call.1} parent=1 // pred_check_branch
      %81 = sbr.rel (0) target = $region53
    $region52: #{tpu_custom_call.1} parent=1 // pred_region
      _
    $region53: #{tpu_custom_call.1} parent=1 // pred_fallthru
      _
    // Predicated region
    $region54: #{tpu_custom_call.1} parent=1 // pred_check
      _
    $region55: #{tpu_custom_call.1} parent=1 // pred_check_branch
      %83 = sbr.rel (0) target = $region57
    $region56: #{tpu_custom_call.1} parent=1 // pred_region
      _
    $region57: #{tpu_custom_call.1} parent=1 // pred_fallthru
      _
    // Predicated region
    $region58: #{tpu_custom_call.1} parent=1 // pred_check
      _
    $region59: #{tpu_custom_call.1} parent=1 // pred_check_branch
      %85 = sbr.rel (0) target = $region61
    $region60: #{tpu_custom_call.1} parent=1 // pred_region
      _
    $region61: #{tpu_custom_call.1} parent=1 // pred_fallthru
      _
    // Predicated region
    $region62: #{tpu_custom_call.1} parent=1 // pred_check
      _
    $region63: #{tpu_custom_call.1} parent=1 // pred_check_branch
      %87 = sbr.rel (0) target = $region65
    $region64: #{tpu_custom_call.1} parent=1 // pred_region
      _
    $region65: #{tpu_custom_call.1} parent=1 // pred_fallthru
      _
    // Predicated region
    $region66: #{tpu_custom_call.1} parent=1 // pred_check
      _
    $region67: #{tpu_custom_call.1} parent=1 // pred_check_branch
      %89 = sbr.rel (0) target = $region69
    $region68: #{tpu_custom_call.1} parent=1 // pred_region
      _
    $region69: #{tpu_custom_call.1} parent=1 // pred_fallthru
      _
    // Predicated region
    $region70: #{tpu_custom_call.1} parent=1 // pred_check
      _
    $region71: #{tpu_custom_call.1} parent=1 // pred_check_branch
      %91 = sbr.rel (0) target = $region73
    $region72: #{tpu_custom_call.1} parent=1 // pred_region
      _
    $region73: #{tpu_custom_call.1} parent=1 // pred_fallthru
      _
    // Predicated region
    $region74: #{tpu_custom_call.1} parent=1 // pred_check
      _
    $region75: #{tpu_custom_call.1} parent=1 // pred_check_branch
      %93 = sbr.rel (0) target = $region77
    $region76: #{tpu_custom_call.1} parent=1 // pred_region
      %s95 = ssub.s32 16384, 16384
      %96 = vsyncadd [#allocation7], %s95
      %s97 = sshll.u32 [#allocation8], 4
      %s98 = int_to_ptr.vmem [resolvable:$true] %s97
      %103 = dma.hbm_to_vmem [thread:$0]  %s18, 16384, %s98, [#allocation7], 512, 512, 32
    $region77: #{tpu_custom_call.1} parent=1 // pred_fallthru
      _
    // Predicated region
    $region78: #{tpu_custom_call.1} parent=1 // pred_check
      _
    $region79: #{tpu_custom_call.1} parent=1 // pred_check_branch
      %105 = sbr.rel (0) target = $region81
    $region80: #{tpu_custom_call.1} parent=1 // pred_region
      _
    $region81: #{tpu_custom_call.1} parent=1 // pred_fallthru
      _
    // Predicated region
    $region82: #{tpu_custom_call.1} parent=1 // pred_check
      _
    $region83: #{tpu_custom_call.1} parent=1 // pred_check_branch
      %107 = sbr.rel (0) target = $region85
    $region84: #{tpu_custom_call.1} parent=1 // pred_region
      %s109 = ssub.s32 16384, 16384
      %110 = vsyncadd [#allocation10], %s109
      %s111 = sshll.u32 [#allocation9], 4
      %s112 = int_to_ptr.vmem [resolvable:$true] %s111
      %117 = dma.hbm_to_vmem [thread:$0]  %s20, 16384, %s112, [#allocation10], 256, 256, 16
    $region85: #{tpu_custom_call.1} parent=1 // pred_fallthru
      _
    // Predicated region
    $region86: #{tpu_custom_call.1} parent=1 // pred_check
      _
    $region87: #{tpu_custom_call.1} parent=1 // pred_check_branch
      %119 = sbr.rel (0) target = $region89
    $region88: #{tpu_custom_call.1} parent=1 // pred_region
      _
    $region89: #{tpu_custom_call.1} parent=1 // pred_fallthru
      _
    // Predicated region
    $region90: #{tpu_custom_call.1} parent=1 // pred_check
      _
    $region91: #{tpu_custom_call.1} parent=1 // pred_check_branch
      %121 = sbr.rel (0) target = $region93
    $region92: #{tpu_custom_call.1} parent=1 // pred_region
      _
    $region93: #{tpu_custom_call.1} parent=1 // pred_fallthru
      _
    // Predicated region
    $region94: #{tpu_custom_call.1} parent=1 // pred_check
      _
    $region95: #{tpu_custom_call.1} parent=1 // pred_check_branch
      %123 = sbr.rel (0) target = $region97
    $region96: #{tpu_custom_call.1} parent=1 // pred_region
      _
    $region97: #{tpu_custom_call.1} parent=1 // pred_fallthru
      _
    // Predicated region
    $region98: #{tpu_custom_call.1} parent=1 // pred_check
      _
    $region99: #{tpu_custom_call.1} parent=1 // pred_check_branch
      %125 = sbr.rel (0) target = $region101
    $region100: #{tpu_custom_call.1} parent=1 // pred_region
      _
    $region101: #{tpu_custom_call.1} parent=1 // pred_fallthru
      _
    // Predicated region
    $region102: #{tpu_custom_call.1} parent=1 // pred_check
      _
    $region103: #{tpu_custom_call.1} parent=1 // pred_check_branch
      %127 = sbr.rel (0) target = $region105
    $region104: #{tpu_custom_call.1} parent=1 // pred_region
      _
    $region105: #{tpu_custom_call.1} parent=1 // pred_fallthru
      _
    // Predicated region
    $region106: #{tpu_custom_call.1} parent=1 // pred_check
      _
    $region107: #{tpu_custom_call.1} parent=1 // pred_check_branch
      %129 = sbr.rel (0) target = $region109
    $region108: #{tpu_custom_call.1} parent=1 // pred_region
      %130 = dma.done [#allocation5], 16384
    $region109: #{tpu_custom_call.1} parent=1 // pred_fallthru
      _
    // Predicated region
    $region110: #{tpu_custom_call.1} parent=1 // pred_check
      _
    $region111: #{tpu_custom_call.1} parent=1 // pred_check_branch
      %132 = sbr.rel (0) target = $region113
    $region112: #{tpu_custom_call.1} parent=1 // pred_region
      %133 = dma.done [#allocation7], 16384
    $region113: #{tpu_custom_call.1} parent=1 // pred_fallthru
      _
    // Predicated region
    $region114: #{tpu_custom_call.1} parent=1 // pred_check
      _
    $region115: #{tpu_custom_call.1} parent=1 // pred_check_branch
      %135 = sbr.rel (0) target = $region117
    $region116: #{tpu_custom_call.1} parent=1 // pred_region
      %136 = dma.done [#allocation7], 16384
    $region117: #{tpu_custom_call.1} parent=1 // pred_fallthru
      _
    // Predicated region
    $region118: #{tpu_custom_call.1} parent=1 // pred_check
      _
    $region119: #{tpu_custom_call.1} parent=1 // pred_check_branch
      %138 = sbr.rel (0) target = $region121
    $region120: #{tpu_custom_call.1} parent=1 // pred_region
      %139 = dma.done [#allocation10], 16384
    $region121: #{tpu_custom_call.1} parent=1 // pred_fallthru
      _
    %v140 = vld [vmem:[%s0] sm:$0xff]
    %v141 = vld [vmem:[%s1] sm:$0x3f]
    %v142 = vld [vmem:[%s2] sm:$0x1]
    %v144 = vlaneseq
    %v145 = vshrl.u32 %v144, 7
    %v146 = vsub.s32 0, %v145
    %v147 = vrot.slane %v142, %v146
    %vm149 = vcmask 48128
    %v151 = vsel %vm149, %v140, 0
    %vm153 = vcmask 1045504
    %v155 = vsel %vm153, %v141, 0
    %157 = vmatprep.subr.mxu0 0.0
    %158 = vmatpush1.msra.mxu0 %v155
    %159 = vmatprep.subr.mxu0 0.0
    %160 = vmatpush1.msra.mxu0 0.0
    %161 = vmatprep.subr.mxu0 0.0
    %162 = vmatpush1.msra.mxu0 0.0
    %163 = vmatprep.subr.mxu0 0.0
    %164 = vmatpush1.msra.mxu0 0.0
    %165 = vmatprep.subr.mxu0 0.0
    %166 = vmatpush1.msra.mxu0 0.0
    %167 = vmatprep.subr.mxu0 0.0
    %168 = vmatpush1.msra.mxu0 0.0
    %169 = vmatprep.subr.mxu0 0.0
    %170 = vmatpush1.msra.mxu0 0.0
    %171 = vmatprep.subr.mxu0 0.0
    %172 = vmatpush1.msra.mxu0 0.0
    %173 = vmatprep.subr.mxu0 0.0
    %174 = vmatpush1.msra.mxu0 0.0
    %175 = vmatprep.subr.mxu0 0.0
    %176 = vmatpush1.msra.mxu0 0.0
    %177 = vmatprep.subr.mxu0 0.0
    %178 = vmatpush1.msra.mxu0 0.0
    %179 = vmatprep.subr.mxu0 0.0
    %180 = vmatpush1.msra.mxu0 0.0
    %181 = vmatprep.subr.mxu0 0.0
    %182 = vmatpush1.msra.mxu0 0.0
    %183 = vmatprep.subr.mxu0 0.0
    %184 = vmatpush1.msra.mxu0 0.0
    %185 = vmatprep.subr.mxu0 0.0
    %186 = vmatpush1.msra.mxu0 0.0
    %187 = vmatprep.subr.mxu0 0.0
    %188 = vmatpush1.msra.mxu0 0.0
    %189 = vmatprep.subr.mxu0 0.0
    %190 = vmatpush1.msra.mxu0 0.0
    %191 = vmatprep.subr.mxu0 0.0
    %192 = vmatpush1.msra.mxu0 0.0
    %193 = vmatprep.subr.mxu0 0.0
    %194 = vmatpush1.msra.mxu0 0.0
    %195 = vmatprep.subr.mxu0 0.0
    %196 = vmatpush1.msra.mxu0 0.0
    %197 = vmatprep.subr.mxu0 0.0
    %198 = vmatpush1.msra.mxu0 0.0
    %199 = vmatprep.subr.mxu0 0.0
    %200 = vmatpush1.msra.mxu0 0.0
    %201 = vmatprep.subr.mxu0 0.0
    %202 = vmatpush1.msra.mxu0 0.0
    %203 = vmatprep.subr.mxu0 0.0
    %204 = vmatpush1.msra.mxu0 0.0
    %205 = vmatprep.subr.mxu0 0.0
    %206 = vmatpush1.msra.mxu0 0.0
    %207 = vmatprep.subr.mxu0 0.0
    %208 = vmatpush1.msra.mxu0 0.0
    %209 = vmatprep.subr.mxu0 0.0
    %210 = vmatpush1.msra.mxu0 0.0
    %211 = vmatprep.subr.mxu0 0.0
    %212 = vmatpush1.msra.mxu0 0.0
    %213 = vmatprep.subr.mxu0 0.0
    %214 = vmatpush1.msra.mxu0 0.0
    %215 = vmatprep.subr.mxu0 0.0
    %216 = vmatpush1.msra.mxu0 0.0
    %217 = vmatprep.subr.mxu0 0.0
    %218 = vmatpush1.msra.mxu0 0.0
    %219 = vmatprep.subr.mxu0 0.0
    %220 = vmatpush1.msra.mxu0 0.0
    %221 = vmatprep.mubr.f32.mxu0 0.0
    %222 = vmatmul.mubr.f32.gmra.mrb[0].mxu0 %v151
    %v223 = vpop.f32.mrb[0].mxu0
    %v224 = vadd.f32 %v147, %v223
    %v225 = vpop.f32.mrb[0].mxu0
    %226 = vdwg.mxu0
    %v227 = vmax.f32 %v224, 0.0
    %v228 = vld [vmem:[%s3] sm:$0xff]
    %v229 = vld [vmem:[%s3 + $0x8] sm:$0xff]
    %v230 = vld [vmem:[%s3 + $0x10] sm:$0xff]
    %v231 = vld [vmem:[%s3 + $0x18] sm:$0xff]
    %v232 = vld [vmem:[%s3 + $0x20] sm:$0xff]
    %v233 = vld [vmem:[%s3 + $0x28] sm:$0xff]
    %v234 = vld [vmem:[%s3 + $0x30] sm:$0xff]
    %v235 = vld [vmem:[%s3 + $0x38] sm:$0xff]
    %v236 = vld [vmem:[%s3 + $0x40] sm:$0xff]
    %v237 = vld [vmem:[%s3 + $0x48] sm:$0xff]
    %v238 = vld [vmem:[%s3 + $0x50] sm:$0xff]
    %v239 = vld [vmem:[%s3 + $0x58] sm:$0xff]
    %v240 = vld [vmem:[%s3 + $0x60] sm:$0xff]
    %v241 = vld [vmem:[%s3 + $0x68] sm:$0xff]
    %v242 = vld [vmem:[%s3 + $0x70] sm:$0xff]
    %v243 = vld [vmem:[%s3 + $0x78] sm:$0xff]
    %v244 = vld [vmem:[%s3 + $0x80] sm:$0xff]
    %v245 = vld [vmem:[%s3 + $0x88] sm:$0xff]
    %v246 = vld [vmem:[%s3 + $0x90] sm:$0xff]
    %v247 = vld [vmem:[%s3 + $0x98] sm:$0xff]
    %v248 = vld [vmem:[%s3 + $0xa0] sm:$0xff]
    %v249 = vld [vmem:[%s3 + $0xa8] sm:$0xff]
    %v250 = vld [vmem:[%s3 + $0xb0] sm:$0xff]
    %v251 = vld [vmem:[%s3 + $0xb8] sm:$0xff]
    %v252 = vld [vmem:[%s3 + $0xc0] sm:$0xff]
    %v253 = vld [vmem:[%s3 + $0xc8] sm:$0xff]
    %v254 = vld [vmem:[%s3 + $0xd0] sm:$0xff]
    %v255 = vld [vmem:[%s3 + $0xd8] sm:$0xff]
    %v256 = vld [vmem:[%s3 + $0xe0] sm:$0xff]
    %v257 = vld [vmem:[%s3 + $0xe8] sm:$0xff]
    %v258 = vld [vmem:[%s3 + $0xf0] sm:$0xff]
    %v259 = vld [vmem:[%s3 + $0xf8] sm:$0xff]
    %v260 = vld [vmem:[%s4] sm:$0x3]
    %v262 = vlaneseq
    %v263 = vshrl.u32 %v262, 7
    %v264 = vsub.s32 0, %v263
    %v265 = vrot.slane %v260, %v264
    %v266 = vlaneseq
    %v267 = vshrl.u32 %v266, 7
    %v268 = vsub.s32 1, %v267
    %v269 = vrot.slane %v260, %v268
    %272 = vmatprep.subr.mxu0 %v229
    %273 = vmatpush1.msra.mxu0 %v228
    %274 = vmatprep.subr.mxu0 %v231
    %275 = vmatpush1.msra.mxu0 %v230
    %276 = vmatprep.subr.mxu0 %v233
    %277 = vmatpush1.msra.mxu0 %v232
    %278 = vmatprep.subr.mxu0 %v235
    %279 = vmatpush1.msra.mxu0 %v234
    %280 = vmatprep.subr.mxu0 %v237
    %281 = vmatpush1.msra.mxu0 %v236
    %282 = vmatprep.subr.mxu0 %v239
    %283 = vmatpush1.msra.mxu0 %v238
    %284 = vmatprep.subr.mxu0 %v241
    %285 = vmatpush1.msra.mxu0 %v240
    %286 = vmatprep.subr.mxu0 %v243
    %287 = vmatpush1.msra.mxu0 %v242
    %288 = vmatprep.subr.mxu0 %v245
    %289 = vmatpush1.msra.mxu0 %v244
    %290 = vmatprep.subr.mxu0 %v247
    %291 = vmatpush1.msra.mxu0 %v246
    %292 = vmatprep.subr.mxu0 %v249
    %293 = vmatpush1.msra.mxu0 %v248
    %294 = vmatprep.subr.mxu0 %v251
    %295 = vmatpush1.msra.mxu0 %v250
    %296 = vmatprep.subr.mxu0 %v253
    %297 = vmatpush1.msra.mxu0 %v252
    %298 = vmatprep.subr.mxu0 %v255
    %299 = vmatpush1.msra.mxu0 %v254
    %300 = vmatprep.subr.mxu0 %v257
    %301 = vmatpush1.msra.mxu0 %v256
    %302 = vmatprep.subr.mxu0 %v259
    %303 = vmatpush1.msra.mxu0 %v258
    %304 = vmatprep.subr.mxu0 0.0
    %305 = vmatpush1.msra.mxu0 0.0
    %306 = vmatprep.subr.mxu0 0.0
    %307 = vmatpush1.msra.mxu0 0.0
    %308 = vmatprep.subr.mxu0 0.0
    %309 = vmatpush1.msra.mxu0 0.0
    %310 = vmatprep.subr.mxu0 0.0
    %311 = vmatpush1.msra.mxu0 0.0
    %312 = vmatprep.subr.mxu0 0.0
    %313 = vmatpush1.msra.mxu0 0.0
    %314 = vmatprep.subr.mxu0 0.0
    %315 = vmatpush1.msra.mxu0 0.0
    %316 = vmatprep.subr.mxu0 0.0
    %317 = vmatpush1.msra.mxu0 0.0
    %318 = vmatprep.subr.mxu0 0.0
    %319 = vmatpush1.msra.mxu0 0.0
    %320 = vmatprep.subr.mxu0 0.0
    %321 = vmatpush1.msra.mxu0 0.0
    %322 = vmatprep.subr.mxu0 0.0
    %323 = vmatpush1.msra.mxu0 0.0
    %324 = vmatprep.subr.mxu0 0.0
    %325 = vmatpush1.msra.mxu0 0.0
    %326 = vmatprep.subr.mxu0 0.0
    %327 = vmatpush1.msra.mxu0 0.0
    %328 = vmatprep.subr.mxu0 0.0
    %329 = vmatpush1.msra.mxu0 0.0
    %330 = vmatprep.subr.mxu0 0.0
    %331 = vmatpush1.msra.mxu0 0.0
    %332 = vmatprep.subr.mxu0 0.0
    %333 = vmatpush1.msra.mxu0 0.0
    %334 = vmatprep.subr.mxu0 0.0
    %335 = vmatpush1.msra.mxu0 0.0
    %336 = vmatprep.mubr.f32.mxu0 0.0
    %337 = vmatmul.mubr.f32.gmra.mrb[0].mxu0 %v227
    %v338 = vpop.f32.mrb[0].mxu0
    %v339 = vadd.f32 %v265, %v338
    %v340 = vpop.f32.mrb[0].mxu0
    %v341 = vadd.f32 %v269, %v340
    %342 = vdwg.mxu0
    %v343 = vmax.f32 %v339, 0.0
    %v344 = vmax.f32 %v341, 0.0
    %v345 = vld [vmem:[#allocation4] sm:$0xff]
    %v346 = vld [vmem:[#allocation4 + $0x8] sm:$0xff]
    %v347 = vld [vmem:[#allocation4 + $0x10] sm:$0xff]
    %v348 = vld [vmem:[#allocation4 + $0x18] sm:$0xff]
    %v349 = vld [vmem:[#allocation4 + $0x20] sm:$0xff]
    %v350 = vld [vmem:[#allocation4 + $0x28] sm:$0xff]
    %v351 = vld [vmem:[#allocation4 + $0x30] sm:$0xff]
    %v352 = vld [vmem:[#allocation4 + $0x38] sm:$0xff]
    %v353 = vld [vmem:[#allocation4 + $0x40] sm:$0xff]
    %v354 = vld [vmem:[#allocation4 + $0x48] sm:$0xff]
    %v355 = vld [vmem:[#allocation4 + $0x50] sm:$0xff]
    %v356 = vld [vmem:[#allocation4 + $0x58] sm:$0xff]
    %v357 = vld [vmem:[#allocation4 + $0x60] sm:$0xff]
    %v358 = vld [vmem:[#allocation4 + $0x68] sm:$0xff]
    %v359 = vld [vmem:[#allocation4 + $0x70] sm:$0xff]
    %v360 = vld [vmem:[#allocation4 + $0x78] sm:$0xff]
    %v361 = vld [vmem:[#allocation4 + $0x80] sm:$0xff]
    %v362 = vld [vmem:[#allocation4 + $0x88] sm:$0xff]
    %v363 = vld [vmem:[#allocation4 + $0x90] sm:$0xff]
    %v364 = vld [vmem:[#allocation4 + $0x98] sm:$0xff]
    %v365 = vld [vmem:[#allocation4 + $0xa0] sm:$0xff]
    %v366 = vld [vmem:[#allocation4 + $0xa8] sm:$0xff]
    %v367 = vld [vmem:[#allocation4 + $0xb0] sm:$0xff]
    %v368 = vld [vmem:[#allocation4 + $0xb8] sm:$0xff]
    %v369 = vld [vmem:[#allocation4 + $0xc0] sm:$0xff]
    %v370 = vld [vmem:[#allocation4 + $0xc8] sm:$0xff]
    %v371 = vld [vmem:[#allocation4 + $0xd0] sm:$0xff]
    %v372 = vld [vmem:[#allocation4 + $0xd8] sm:$0xff]
    %v373 = vld [vmem:[#allocation4 + $0xe0] sm:$0xff]
    %v374 = vld [vmem:[#allocation4 + $0xe8] sm:$0xff]
    %v375 = vld [vmem:[#allocation4 + $0xf0] sm:$0xff]
    %v376 = vld [vmem:[#allocation4 + $0xf8] sm:$0xff]
    %v377 = vld [vmem:[#allocation4 + $0x100] sm:$0xff]
    %v378 = vld [vmem:[#allocation4 + $0x108] sm:$0xff]
    %v379 = vld [vmem:[#allocation4 + $0x110] sm:$0xff]
    %v380 = vld [vmem:[#allocation4 + $0x118] sm:$0xff]
    %v381 = vld [vmem:[#allocation4 + $0x120] sm:$0xff]
    %v382 = vld [vmem:[#allocation4 + $0x128] sm:$0xff]
    %v383 = vld [vmem:[#allocation4 + $0x130] sm:$0xff]
    %v384 = vld [vmem:[#allocation4 + $0x138] sm:$0xff]
    %v385 = vld [vmem:[#allocation4 + $0x140] sm:$0xff]
    %v386 = vld [vmem:[#allocation4 + $0x148] sm:$0xff]
    %v387 = vld [vmem:[#allocation4 + $0x150] sm:$0xff]
    %v388 = vld [vmem:[#allocation4 + $0x158] sm:$0xff]
    %v389 = vld [vmem:[#allocation4 + $0x160] sm:$0xff]
    %v390 = vld [vmem:[#allocation4 + $0x168] sm:$0xff]
    %v391 = vld [vmem:[#allocation4 + $0x170] sm:$0xff]
    %v392 = vld [vmem:[#allocation4 + $0x178] sm:$0xff]
    %v393 = vld [vmem:[#allocation4 + $0x180] sm:$0xff]
    %v394 = vld [vmem:[#allocation4 + $0x188] sm:$0xff]
    %v395 = vld [vmem:[#allocation4 + $0x190] sm:$0xff]
    %v396 = vld [vmem:[#allocation4 + $0x198] sm:$0xff]
    %v397 = vld [vmem:[#allocation4 + $0x1a0] sm:$0xff]
    %v398 = vld [vmem:[#allocation4 + $0x1a8] sm:$0xff]
    %v399 = vld [vmem:[#allocation4 + $0x1b0] sm:$0xff]
    %v400 = vld [vmem:[#allocation4 + $0x1b8] sm:$0xff]
    %v401 = vld [vmem:[#allocation4 + $0x1c0] sm:$0xff]
    %v402 = vld [vmem:[#allocation4 + $0x1c8] sm:$0xff]
    %v403 = vld [vmem:[#allocation4 + $0x1d0] sm:$0xff]
    %v404 = vld [vmem:[#allocation4 + $0x1d8] sm:$0xff]
    %v405 = vld [vmem:[#allocation4 + $0x1e0] sm:$0xff]
    %v406 = vld [vmem:[#allocation4 + $0x1e8] sm:$0xff]
    %v407 = vld [vmem:[#allocation4 + $0x1f0] sm:$0xff]
    %v408 = vld [vmem:[#allocation4 + $0x1f8] sm:$0xff]
    %v409 = vld [vmem:[#allocation4 + $0x200] sm:$0xff]
    %v410 = vld [vmem:[#allocation4 + $0x208] sm:$0xff]
    %v411 = vld [vmem:[#allocation4 + $0x210] sm:$0xff]
    %v412 = vld [vmem:[#allocation4 + $0x218] sm:$0xff]
    %v413 = vld [vmem:[#allocation4 + $0x220] sm:$0xff]
    %v414 = vld [vmem:[#allocation4 + $0x228] sm:$0xff]
    %v415 = vld [vmem:[#allocation4 + $0x230] sm:$0xff]
    %v416 = vld [vmem:[#allocation4 + $0x238] sm:$0xff]
    %v417 = vld [vmem:[#allocation4 + $0x240] sm:$0xff]
    %v418 = vld [vmem:[#allocation4 + $0x248] sm:$0xff]
    %v419 = vld [vmem:[#allocation4 + $0x250] sm:$0xff]
    %v420 = vld [vmem:[#allocation4 + $0x258] sm:$0xff]
    %v421 = vld [vmem:[#allocation4 + $0x260] sm:$0xff]
    %v422 = vld [vmem:[#allocation4 + $0x268] sm:$0xff]
    %v423 = vld [vmem:[#allocation4 + $0x270] sm:$0xff]
    %v424 = vld [vmem:[#allocation4 + $0x278] sm:$0xff]
    %v425 = vld [vmem:[#allocation4 + $0x280] sm:$0xff]
    %v426 = vld [vmem:[#allocation4 + $0x288] sm:$0xff]
    %v427 = vld [vmem:[#allocation4 + $0x290] sm:$0xff]
    %v428 = vld [vmem:[#allocation4 + $0x298] sm:$0xff]
    %v429 = vld [vmem:[#allocation4 + $0x2a0] sm:$0xff]
    %v430 = vld [vmem:[#allocation4 + $0x2a8] sm:$0xff]
    %v431 = vld [vmem:[#allocation4 + $0x2b0] sm:$0xff]
    %v432 = vld [vmem:[#allocation4 + $0x2b8] sm:$0xff]
    %v433 = vld [vmem:[#allocation4 + $0x2c0] sm:$0xff]
    %v434 = vld [vmem:[#allocation4 + $0x2c8] sm:$0xff]
    %v435 = vld [vmem:[#allocation4 + $0x2d0] sm:$0xff]
    %v436 = vld [vmem:[#allocation4 + $0x2d8] sm:$0xff]
    %v437 = vld [vmem:[#allocation4 + $0x2e0] sm:$0xff]
    %v438 = vld [vmem:[#allocation4 + $0x2e8] sm:$0xff]
    %v439 = vld [vmem:[#allocation4 + $0x2f0] sm:$0xff]
    %v440 = vld [vmem:[#allocation4 + $0x2f8] sm:$0xff]
    %v441 = vld [vmem:[#allocation4 + $0x300] sm:$0xff]
    %v442 = vld [vmem:[#allocation4 + $0x308] sm:$0xff]
    %v443 = vld [vmem:[#allocation4 + $0x310] sm:$0xff]
    %v444 = vld [vmem:[#allocation4 + $0x318] sm:$0xff]
    %v445 = vld [vmem:[#allocation4 + $0x320] sm:$0xff]
    %v446 = vld [vmem:[#allocation4 + $0x328] sm:$0xff]
    %v447 = vld [vmem:[#allocation4 + $0x330] sm:$0xff]
    %v448 = vld [vmem:[#allocation4 + $0x338] sm:$0xff]
    %v449 = vld [vmem:[#allocation4 + $0x340] sm:$0xff]
    %v450 = vld [vmem:[#allocation4 + $0x348] sm:$0xff]
    %v451 = vld [vmem:[#allocation4 + $0x350] sm:$0xff]
    %v452 = vld [vmem:[#allocation4 + $0x358] sm:$0xff]
    %v453 = vld [vmem:[#allocation4 + $0x360] sm:$0xff]
    %v454 = vld [vmem:[#allocation4 + $0x368] sm:$0xff]
    %v455 = vld [vmem:[#allocation4 + $0x370] sm:$0xff]
    %v456 = vld [vmem:[#allocation4 + $0x378] sm:$0xff]
    %v457 = vld [vmem:[#allocation4 + $0x380] sm:$0xff]
    %v458 = vld [vmem:[#allocation4 + $0x388] sm:$0xff]
    %v459 = vld [vmem:[#allocation4 + $0x390] sm:$0xff]
    %v460 = vld [vmem:[#allocation4 + $0x398] sm:$0xff]
    %v461 = vld [vmem:[#allocation4 + $0x3a0] sm:$0xff]
    %v462 = vld [vmem:[#allocation4 + $0x3a8] sm:$0xff]
    %v463 = vld [vmem:[#allocation4 + $0x3b0] sm:$0xff]
    %v464 = vld [vmem:[#allocation4 + $0x3b8] sm:$0xff]
    %v465 = vld [vmem:[#allocation4 + $0x3c0] sm:$0xff]
    %v466 = vld [vmem:[#allocation4 + $0x3c8] sm:$0xff]
    %v467 = vld [vmem:[#allocation4 + $0x3d0] sm:$0xff]
    %v468 = vld [vmem:[#allocation4 + $0x3d8] sm:$0xff]
    %v469 = vld [vmem:[#allocation4 + $0x3e0] sm:$0xff]
    %v470 = vld [vmem:[#allocation4 + $0x3e8] sm:$0xff]
    %v471 = vld [vmem:[#allocation4 + $0x3f0] sm:$0xff]
    %v472 = vld [vmem:[#allocation4 + $0x3f8] sm:$0xff]
    %v473 = vld [vmem:[%s6] sm:$0xf]
    %v475 = vlaneseq
    %v476 = vshrl.u32 %v475, 7
    %v477 = vsub.s32 0, %v476
    %v478 = vrot.slane %v473, %v477
    %v479 = vlaneseq
    %v480 = vshrl.u32 %v479, 7
    %v481 = vsub.s32 1, %v480
    %v482 = vrot.slane %v473, %v481
    %v483 = vlaneseq
    %v484 = vshrl.u32 %v483, 7
    %v485 = vsub.s32 2, %v484
    %v486 = vrot.slane %v473, %v485
    %v487 = vlaneseq
    %v488 = vshrl.u32 %v487, 7
    %v489 = vsub.s32 3, %v488
    %v490 = vrot.slane %v473, %v489
    %495 = vmatprep.subr.mxu0 %v346
    %496 = vmatpush1.msra.mxu0 %v345
    %497 = vmatprep.subr.mxu0 %v350
    %498 = vmatpush1.msra.mxu0 %v349
    %499 = vmatprep.subr.mxu0 %v354
    %500 = vmatpush1.msra.mxu0 %v353
    %501 = vmatprep.subr.mxu0 %v358
    %502 = vmatpush1.msra.mxu0 %v357
    %503 = vmatprep.subr.mxu0 %v362
    %504 = vmatpush1.msra.mxu0 %v361
    %505 = vmatprep.subr.mxu0 %v366
    %506 = vmatpush1.msra.mxu0 %v365
    %507 = vmatprep.subr.mxu0 %v370
    %508 = vmatpush1.msra.mxu0 %v369
    %509 = vmatprep.subr.mxu0 %v374
    %510 = vmatpush1.msra.mxu0 %v373
    %511 = vmatprep.subr.mxu0 %v378
    %512 = vmatpush1.msra.mxu0 %v377
    %513 = vmatprep.subr.mxu0 %v382
    %514 = vmatpush1.msra.mxu0 %v381
    %515 = vmatprep.subr.mxu0 %v386
    %516 = vmatpush1.msra.mxu0 %v385
    %517 = vmatprep.subr.mxu0 %v390
    %518 = vmatpush1.msra.mxu0 %v389
    %519 = vmatprep.subr.mxu0 %v394
    %520 = vmatpush1.msra.mxu0 %v393
    %521 = vmatprep.subr.mxu0 %v398
    %522 = vmatpush1.msra.mxu0 %v397
    %523 = vmatprep.subr.mxu0 %v402
    %524 = vmatpush1.msra.mxu0 %v401
    %525 = vmatprep.subr.mxu0 %v406
    %526 = vmatpush1.msra.mxu0 %v405
    %527 = vmatprep.subr.mxu0 %v410
    %528 = vmatpush1.msra.mxu0 %v409
    %529 = vmatprep.subr.mxu0 %v414
    %530 = vmatpush1.msra.mxu0 %v413
    %531 = vmatprep.subr.mxu0 %v418
    %532 = vmatpush1.msra.mxu0 %v417
    %533 = vmatprep.subr.mxu0 %v422
    %534 = vmatpush1.msra.mxu0 %v421
    %535 = vmatprep.subr.mxu0 %v426
    %536 = vmatpush1.msra.mxu0 %v425
    %537 = vmatprep.subr.mxu0 %v430
    %538 = vmatpush1.msra.mxu0 %v429
    %539 = vmatprep.subr.mxu0 %v434
    %540 = vmatpush1.msra.mxu0 %v433
    %541 = vmatprep.subr.mxu0 %v438
    %542 = vmatpush1.msra.mxu0 %v437
    %543 = vmatprep.subr.mxu0 %v442
    %544 = vmatpush1.msra.mxu0 %v441
    %545 = vmatprep.subr.mxu0 %v446
    %546 = vmatpush1.msra.mxu0 %v445
    %547 = vmatprep.subr.mxu0 %v450
    %548 = vmatpush1.msra.mxu0 %v449
    %549 = vmatprep.subr.mxu0 %v454
    %550 = vmatpush1.msra.mxu0 %v453
    %551 = vmatprep.subr.mxu0 %v458
    %552 = vmatpush1.msra.mxu0 %v457
    %553 = vmatprep.subr.mxu0 %v462
    %554 = vmatpush1.msra.mxu0 %v461
    %555 = vmatprep.subr.mxu0 %v466
    %556 = vmatpush1.msra.mxu0 %v465
    %557 = vmatprep.subr.mxu0 %v470
    %558 = vmatpush1.msra.mxu0 %v469
    %559 = vmatprep.mubr.f32.mxu0 %v344
    %560 = vmatmul.mubr.f32.gmra.mrb[0].mxu0 %v343
    %v561 = vpop.f32.mrb[0].mxu0
    %v562 = vadd.f32 %v478, %v561
    %v563 = vpop.f32.mrb[0].mxu0
    %v564 = vadd.f32 %v482, %v563
    %565 = vdwg.mxu0
    %566 = vmatprep.subr.mxu0 %v348
    %567 = vmatpush1.msra.mxu0 %v347
    %568 = vmatprep.subr.mxu0 %v352
    %569 = vmatpush1.msra.mxu0 %v351
    %570 = vmatprep.subr.mxu0 %v356
    %571 = vmatpush1.msra.mxu0 %v355
    %572 = vmatprep.subr.mxu0 %v360
    %573 = vmatpush1.msra.mxu0 %v359
    %574 = vmatprep.subr.mxu0 %v364
    %575 = vmatpush1.msra.mxu0 %v363
    %576 = vmatprep.subr.mxu0 %v368
    %577 = vmatpush1.msra.mxu0 %v367
    %578 = vmatprep.subr.mxu0 %v372
    %579 = vmatpush1.msra.mxu0 %v371
    %580 = vmatprep.subr.mxu0 %v376
    %581 = vmatpush1.msra.mxu0 %v375
    %582 = vmatprep.subr.mxu0 %v380
    %583 = vmatpush1.msra.mxu0 %v379
    %584 = vmatprep.subr.mxu0 %v384
    %585 = vmatpush1.msra.mxu0 %v383
    %586 = vmatprep.subr.mxu0 %v388
    %587 = vmatpush1.msra.mxu0 %v387
    %588 = vmatprep.subr.mxu0 %v392
    %589 = vmatpush1.msra.mxu0 %v391
    %590 = vmatprep.subr.mxu0 %v396
    %591 = vmatpush1.msra.mxu0 %v395
    %592 = vmatprep.subr.mxu0 %v400
    %593 = vmatpush1.msra.mxu0 %v399
    %594 = vmatprep.subr.mxu0 %v404
    %595 = vmatpush1.msra.mxu0 %v403
    %596 = vmatprep.subr.mxu0 %v408
    %597 = vmatpush1.msra.mxu0 %v407
    %598 = vmatprep.subr.mxu0 %v412
    %599 = vmatpush1.msra.mxu0 %v411
    %600 = vmatprep.subr.mxu0 %v416
    %601 = vmatpush1.msra.mxu0 %v415
    %602 = vmatprep.subr.mxu0 %v420
    %603 = vmatpush1.msra.mxu0 %v419
    %604 = vmatprep.subr.mxu0 %v424
    %605 = vmatpush1.msra.mxu0 %v423
    %606 = vmatprep.subr.mxu0 %v428
    %607 = vmatpush1.msra.mxu0 %v427
    %608 = vmatprep.subr.mxu0 %v432
    %609 = vmatpush1.msra.mxu0 %v431
    %610 = vmatprep.subr.mxu0 %v436
    %611 = vmatpush1.msra.mxu0 %v435
    %612 = vmatprep.subr.mxu0 %v440
    %613 = vmatpush1.msra.mxu0 %v439
    %614 = vmatprep.subr.mxu0 %v444
    %615 = vmatpush1.msra.mxu0 %v443
    %616 = vmatprep.subr.mxu0 %v448
    %617 = vmatpush1.msra.mxu0 %v447
    %618 = vmatprep.subr.mxu0 %v452
    %619 = vmatpush1.msra.mxu0 %v451
    %620 = vmatprep.subr.mxu0 %v456
    %621 = vmatpush1.msra.mxu0 %v455
    %622 = vmatprep.subr.mxu0 %v460
    %623 = vmatpush1.msra.mxu0 %v459
    %624 = vmatprep.subr.mxu0 %v464
    %625 = vmatpush1.msra.mxu0 %v463
    %626 = vmatprep.subr.mxu0 %v468
    %627 = vmatpush1.msra.mxu0 %v467
    %628 = vmatprep.subr.mxu0 %v472
    %629 = vmatpush1.msra.mxu0 %v471
    %630 = vmatprep.mubr.f32.mxu0 %v344
    %631 = vmatmul.mubr.f32.gmra.mrb[0].mxu0 %v343
    %v632 = vpop.f32.mrb[0].mxu0
    %v633 = vadd.f32 %v486, %v632
    %v634 = vpop.f32.mrb[0].mxu0
    %v635 = vadd.f32 %v490, %v634
    %636 = vdwg.mxu0
    %v637 = vmax.f32 %v562, 0.0
    %v638 = vmax.f32 %v564, 0.0
    %v639 = vmax.f32 %v633, 0.0
    %v640 = vmax.f32 %v635, 0.0
    %v641 = vld [vmem:[#allocation6] sm:$0xff]
    %v642 = vld [vmem:[#allocation6 + $0x8] sm:$0xff]
    %v643 = vld [vmem:[#allocation6 + $0x10] sm:$0xff]
    %v644 = vld [vmem:[#allocation6 + $0x18] sm:$0xff]
    %v645 = vld [vmem:[#allocation6 + $0x20] sm:$0xff]
    %v646 = vld [vmem:[#allocation6 + $0x28] sm:$0xff]
    %v647 = vld [vmem:[#allocation6 + $0x30] sm:$0xff]
    %v648 = vld [vmem:[#allocation6 + $0x38] sm:$0xff]
    %v649 = vld [vmem:[#allocation6 + $0x40] sm:$0xff]
    %v650 = vld [vmem:[#allocation6 + $0x48] sm:$0xff]
    %v651 = vld [vmem:[#allocation6 + $0x50] sm:$0xff]
    %v652 = vld [vmem:[#allocation6 + $0x58] sm:$0xff]
    %v653 = vld [vmem:[#allocation6 + $0x60] sm:$0xff]
    %v654 = vld [vmem:[#allocation6 + $0x68] sm:$0xff]
    %v655 = vld [vmem:[#allocation6 + $0x70] sm:$0xff]
    %v656 = vld [vmem:[#allocation6 + $0x78] sm:$0xff]
    %v657 = vld [vmem:[#allocation6 + $0x80] sm:$0xff]
    %v658 = vld [vmem:[#allocation6 + $0x88] sm:$0xff]
    %v659 = vld [vmem:[#allocation6 + $0x90] sm:$0xff]
    %v660 = vld [vmem:[#allocation6 + $0x98] sm:$0xff]
    %v661 = vld [vmem:[#allocation6 + $0xa0] sm:$0xff]
    %v662 = vld [vmem:[#allocation6 + $0xa8] sm:$0xff]
    %v663 = vld [vmem:[#allocation6 + $0xb0] sm:$0xff]
    %v664 = vld [vmem:[#allocation6 + $0xb8] sm:$0xff]
    %v665 = vld [vmem:[#allocation6 + $0xc0] sm:$0xff]
    %v666 = vld [vmem:[#allocation6 + $0xc8] sm:$0xff]
    %v667 = vld [vmem:[#allocation6 + $0xd0] sm:$0xff]
    %v668 = vld [vmem:[#allocation6 + $0xd8] sm:$0xff]
    %v669 = vld [vmem:[#allocation6 + $0xe0] sm:$0xff]
    %v670 = vld [vmem:[#allocation6 + $0xe8] sm:$0xff]
    %v671 = vld [vmem:[#allocation6 + $0xf0] sm:$0xff]
    %v672 = vld [vmem:[#allocation6 + $0xf8] sm:$0xff]
    %v673 = vld [vmem:[#allocation6 + $0x100] sm:$0xff]
    %v674 = vld [vmem:[#allocation6 + $0x108] sm:$0xff]
    %v675 = vld [vmem:[#allocation6 + $0x110] sm:$0xff]
    %v676 = vld [vmem:[#allocation6 + $0x118] sm:$0xff]
    %v677 = vld [vmem:[#allocation6 + $0x120] sm:$0xff]
    %v678 = vld [vmem:[#allocation6 + $0x128] sm:$0xff]
    %v679 = vld [vmem:[#allocation6 + $0x130] sm:$0xff]
    %v680 = vld [vmem:[#allocation6 + $0x138] sm:$0xff]
    %v681 = vld [vmem:[#allocation6 + $0x140] sm:$0xff]
    %v682 = vld [vmem:[#allocation6 + $0x148] sm:$0xff]
    %v683 = vld [vmem:[#allocation6 + $0x150] sm:$0xff]
    %v684 = vld [vmem:[#allocation6 + $0x158] sm:$0xff]
    %v685 = vld [vmem:[#allocation6 + $0x160] sm:$0xff]
    %v686 = vld [vmem:[#allocation6 + $0x168] sm:$0xff]
    %v687 = vld [vmem:[#allocation6 + $0x170] sm:$0xff]
    %v688 = vld [vmem:[#allocation6 + $0x178] sm:$0xff]
    %v689 = vld [vmem:[#allocation6 + $0x180] sm:$0xff]
    %v690 = vld [vmem:[#allocation6 + $0x188] sm:$0xff]
    %v691 = vld [vmem:[#allocation6 + $0x190] sm:$0xff]
    %v692 = vld [vmem:[#allocation6 + $0x198] sm:$0xff]
    %v693 = vld [vmem:[#allocation6 + $0x1a0] sm:$0xff]
    %v694 = vld [vmem:[#allocation6 + $0x1a8] sm:$0xff]
    %v695 = vld [vmem:[#allocation6 + $0x1b0] sm:$0xff]
    %v696 = vld [vmem:[#allocation6 + $0x1b8] sm:$0xff]
    %v697 = vld [vmem:[#allocation6 + $0x1c0] sm:$0xff]
    %v698 = vld [vmem:[#allocation6 + $0x1c8] sm:$0xff]
    %v699 = vld [vmem:[#allocation6 + $0x1d0] sm:$0xff]
    %v700 = vld [vmem:[#allocation6 + $0x1d8] sm:$0xff]
    %v701 = vld [vmem:[#allocation6 + $0x1e0] sm:$0xff]
    %v702 = vld [vmem:[#allocation6 + $0x1e8] sm:$0xff]
    %v703 = vld [vmem:[#allocation6 + $0x1f0] sm:$0xff]
    %v704 = vld [vmem:[#allocation6 + $0x1f8] sm:$0xff]
    %v705 = vld [vmem:[#allocation6 + $0x200] sm:$0xff]
    %v706 = vld [vmem:[#allocation6 + $0x208] sm:$0xff]
    %v707 = vld [vmem:[#allocation6 + $0x210] sm:$0xff]
    %v708 = vld [vmem:[#allocation6 + $0x218] sm:$0xff]
    %v709 = vld [vmem:[#allocation6 + $0x220] sm:$0xff]
    %v710 = vld [vmem:[#allocation6 + $0x228] sm:$0xff]
    %v711 = vld [vmem:[#allocation6 + $0x230] sm:$0xff]
    %v712 = vld [vmem:[#allocation6 + $0x238] sm:$0xff]
    %v713 = vld [vmem:[#allocation6 + $0x240] sm:$0xff]
    %v714 = vld [vmem:[#allocation6 + $0x248] sm:$0xff]
    %v715 = vld [vmem:[#allocation6 + $0x250] sm:$0xff]
    %v716 = vld [vmem:[#allocation6 + $0x258] sm:$0xff]
    %v717 = vld [vmem:[#allocation6 + $0x260] sm:$0xff]
    %v718 = vld [vmem:[#allocation6 + $0x268] sm:$0xff]
    %v719 = vld [vmem:[#allocation6 + $0x270] sm:$0xff]
    %v720 = vld [vmem:[#allocation6 + $0x278] sm:$0xff]
    %v721 = vld [vmem:[#allocation6 + $0x280] sm:$0xff]
    %v722 = vld [vmem:[#allocation6 + $0x288] sm:$0xff]
    %v723 = vld [vmem:[#allocation6 + $0x290] sm:$0xff]
    %v724 = vld [vmem:[#allocation6 + $0x298] sm:$0xff]
    %v725 = vld [vmem:[#allocation6 + $0x2a0] sm:$0xff]
    %v726 = vld [vmem:[#allocation6 + $0x2a8] sm:$0xff]
    %v727 = vld [vmem:[#allocation6 + $0x2b0] sm:$0xff]
    %v728 = vld [vmem:[#allocation6 + $0x2b8] sm:$0xff]
    %v729 = vld [vmem:[#allocation6 + $0x2c0] sm:$0xff]
    %v730 = vld [vmem:[#allocation6 + $0x2c8] sm:$0xff]
    %v731 = vld [vmem:[#allocation6 + $0x2d0] sm:$0xff]
    %v732 = vld [vmem:[#allocation6 + $0x2d8] sm:$0xff]
    %v733 = vld [vmem:[#allocation6 + $0x2e0] sm:$0xff]
    %v734 = vld [vmem:[#allocation6 + $0x2e8] sm:$0xff]
    %v735 = vld [vmem:[#allocation6 + $0x2f0] sm:$0xff]
    %v736 = vld [vmem:[#allocation6 + $0x2f8] sm:$0xff]
    %v737 = vld [vmem:[#allocation6 + $0x300] sm:$0xff]
    %v738 = vld [vmem:[#allocation6 + $0x308] sm:$0xff]
    %v739 = vld [vmem:[#allocation6 + $0x310] sm:$0xff]
    %v740 = vld [vmem:[#allocation6 + $0x318] sm:$0xff]
    %v741 = vld [vmem:[#allocation6 + $0x320] sm:$0xff]
    %v742 = vld [vmem:[#allocation6 + $0x328] sm:$0xff]
    %v743 = vld [vmem:[#allocation6 + $0x330] sm:$0xff]
    %v744 = vld [vmem:[#allocation6 + $0x338] sm:$0xff]
    %v745 = vld [vmem:[#allocation6 + $0x340] sm:$0xff]
    %v746 = vld [vmem:[#allocation6 + $0x348] sm:$0xff]
    %v747 = vld [vmem:[#allocation6 + $0x350] sm:$0xff]
    %v748 = vld [vmem:[#allocation6 + $0x358] sm:$0xff]
    %v749 = vld [vmem:[#allocation6 + $0x360] sm:$0xff]
    %v750 = vld [vmem:[#allocation6 + $0x368] sm:$0xff]
    %v751 = vld [vmem:[#allocation6 + $0x370] sm:$0xff]
    %v752 = vld [vmem:[#allocation6 + $0x378] sm:$0xff]
    %v753 = vld [vmem:[#allocation6 + $0x380] sm:$0xff]
    %v754 = vld [vmem:[#allocation6 + $0x388] sm:$0xff]
    %v755 = vld [vmem:[#allocation6 + $0x390] sm:$0xff]
    %v756 = vld [vmem:[#allocation6 + $0x398] sm:$0xff]
    %v757 = vld [vmem:[#allocation6 + $0x3a0] sm:$0xff]
    %v758 = vld [vmem:[#allocation6 + $0x3a8] sm:$0xff]
    %v759 = vld [vmem:[#allocation6 + $0x3b0] sm:$0xff]
    %v760 = vld [vmem:[#allocation6 + $0x3b8] sm:$0xff]
    %v761 = vld [vmem:[#allocation6 + $0x3c0] sm:$0xff]
    %v762 = vld [vmem:[#allocation6 + $0x3c8] sm:$0xff]
    %v763 = vld [vmem:[#allocation6 + $0x3d0] sm:$0xff]
    %v764 = vld [vmem:[#allocation6 + $0x3d8] sm:$0xff]
    %v765 = vld [vmem:[#allocation6 + $0x3e0] sm:$0xff]
    %v766 = vld [vmem:[#allocation6 + $0x3e8] sm:$0xff]
    %v767 = vld [vmem:[#allocation6 + $0x3f0] sm:$0xff]
    %v768 = vld [vmem:[#allocation6 + $0x3f8] sm:$0xff]
    %v769 = vld [vmem:[%s8] sm:$0x3]
    %v771 = vlaneseq
    %v772 = vshrl.u32 %v771, 7
    %v773 = vsub.s32 0, %v772
    %v774 = vrot.slane %v769, %v773
    %v775 = vlaneseq
    %v776 = vshrl.u32 %v775, 7
    %v777 = vsub.s32 1, %v776
    %v778 = vrot.slane %v769, %v777
    %781 = vmatprep.subr.mxu0 %v642
    %782 = vmatpush1.msra.mxu0 %v641
    %783 = vmatprep.subr.mxu0 %v644
    %784 = vmatpush1.msra.mxu0 %v643
    %785 = vmatprep.subr.mxu0 %v646
    %786 = vmatpush1.msra.mxu0 %v645
    %787 = vmatprep.subr.mxu0 %v648
    %788 = vmatpush1.msra.mxu0 %v647
    %789 = vmatprep.subr.mxu0 %v650
    %790 = vmatpush1.msra.mxu0 %v649
    %791 = vmatprep.subr.mxu0 %v652
    %792 = vmatpush1.msra.mxu0 %v651
    %793 = vmatprep.subr.mxu0 %v654
    %794 = vmatpush1.msra.mxu0 %v653
    %795 = vmatprep.subr.mxu0 %v656
    %796 = vmatpush1.msra.mxu0 %v655
    %797 = vmatprep.subr.mxu0 %v658
    %798 = vmatpush1.msra.mxu0 %v657
    %799 = vmatprep.subr.mxu0 %v660
    %800 = vmatpush1.msra.mxu0 %v659
    %801 = vmatprep.subr.mxu0 %v662
    %802 = vmatpush1.msra.mxu0 %v661
    %803 = vmatprep.subr.mxu0 %v664
    %804 = vmatpush1.msra.mxu0 %v663
    %805 = vmatprep.subr.mxu0 %v666
    %806 = vmatpush1.msra.mxu0 %v665
    %807 = vmatprep.subr.mxu0 %v668
    %808 = vmatpush1.msra.mxu0 %v667
    %809 = vmatprep.subr.mxu0 %v670
    %810 = vmatpush1.msra.mxu0 %v669
    %811 = vmatprep.subr.mxu0 %v672
    %812 = vmatpush1.msra.mxu0 %v671
    %813 = vmatprep.subr.mxu0 %v674
    %814 = vmatpush1.msra.mxu0 %v673
    %815 = vmatprep.subr.mxu0 %v676
    %816 = vmatpush1.msra.mxu0 %v675
    %817 = vmatprep.subr.mxu0 %v678
    %818 = vmatpush1.msra.mxu0 %v677
    %819 = vmatprep.subr.mxu0 %v680
    %820 = vmatpush1.msra.mxu0 %v679
    %821 = vmatprep.subr.mxu0 %v682
    %822 = vmatpush1.msra.mxu0 %v681
    %823 = vmatprep.subr.mxu0 %v684
    %824 = vmatpush1.msra.mxu0 %v683
    %825 = vmatprep.subr.mxu0 %v686
    %826 = vmatpush1.msra.mxu0 %v685
    %827 = vmatprep.subr.mxu0 %v688
    %828 = vmatpush1.msra.mxu0 %v687
    %829 = vmatprep.subr.mxu0 %v690
    %830 = vmatpush1.msra.mxu0 %v689
    %831 = vmatprep.subr.mxu0 %v692
    %832 = vmatpush1.msra.mxu0 %v691
    %833 = vmatprep.subr.mxu0 %v694
    %834 = vmatpush1.msra.mxu0 %v693
    %835 = vmatprep.subr.mxu0 %v696
    %836 = vmatpush1.msra.mxu0 %v695
    %837 = vmatprep.subr.mxu0 %v698
    %838 = vmatpush1.msra.mxu0 %v697
    %839 = vmatprep.subr.mxu0 %v700
    %840 = vmatpush1.msra.mxu0 %v699
    %841 = vmatprep.subr.mxu0 %v702
    %842 = vmatpush1.msra.mxu0 %v701
    %843 = vmatprep.subr.mxu0 %v704
    %844 = vmatpush1.msra.mxu0 %v703
    %845 = vmatprep.mubr.f32.mxu0 %v638
    %846 = vmatmul.mubr.f32.gmra.mrb[0].mxu0 %v637
    %v847 = vpop.f32.mrb[0].mxu0
    %v848 = vadd.f32 %v774, %v847
    %v849 = vpop.f32.mrb[0].mxu0
    %v850 = vadd.f32 %v778, %v849
    %851 = vdwg.mxu0
    %852 = vmatprep.subr.mxu0 %v706
    %853 = vmatpush1.msra.mxu0 %v705
    %854 = vmatprep.subr.mxu0 %v708
    %855 = vmatpush1.msra.mxu0 %v707
    %856 = vmatprep.subr.mxu0 %v710
    %857 = vmatpush1.msra.mxu0 %v709
    %858 = vmatprep.subr.mxu0 %v712
    %859 = vmatpush1.msra.mxu0 %v711
    %860 = vmatprep.subr.mxu0 %v714
    %861 = vmatpush1.msra.mxu0 %v713
    %862 = vmatprep.subr.mxu0 %v716
    %863 = vmatpush1.msra.mxu0 %v715
    %864 = vmatprep.subr.mxu0 %v718
    %865 = vmatpush1.msra.mxu0 %v717
    %866 = vmatprep.subr.mxu0 %v720
    %867 = vmatpush1.msra.mxu0 %v719
    %868 = vmatprep.subr.mxu0 %v722
    %869 = vmatpush1.msra.mxu0 %v721
    %870 = vmatprep.subr.mxu0 %v724
    %871 = vmatpush1.msra.mxu0 %v723
    %872 = vmatprep.subr.mxu0 %v726
    %873 = vmatpush1.msra.mxu0 %v725
    %874 = vmatprep.subr.mxu0 %v728
    %875 = vmatpush1.msra.mxu0 %v727
    %876 = vmatprep.subr.mxu0 %v730
    %877 = vmatpush1.msra.mxu0 %v729
    %878 = vmatprep.subr.mxu0 %v732
    %879 = vmatpush1.msra.mxu0 %v731
    %880 = vmatprep.subr.mxu0 %v734
    %881 = vmatpush1.msra.mxu0 %v733
    %882 = vmatprep.subr.mxu0 %v736
    %883 = vmatpush1.msra.mxu0 %v735
    %884 = vmatprep.subr.mxu0 %v738
    %885 = vmatpush1.msra.mxu0 %v737
    %886 = vmatprep.subr.mxu0 %v740
    %887 = vmatpush1.msra.mxu0 %v739
    %888 = vmatprep.subr.mxu0 %v742
    %889 = vmatpush1.msra.mxu0 %v741
    %890 = vmatprep.subr.mxu0 %v744
    %891 = vmatpush1.msra.mxu0 %v743
    %892 = vmatprep.subr.mxu0 %v746
    %893 = vmatpush1.msra.mxu0 %v745
    %894 = vmatprep.subr.mxu0 %v748
    %895 = vmatpush1.msra.mxu0 %v747
    %896 = vmatprep.subr.mxu0 %v750
    %897 = vmatpush1.msra.mxu0 %v749
    %898 = vmatprep.subr.mxu0 %v752
    %899 = vmatpush1.msra.mxu0 %v751
    %900 = vmatprep.subr.mxu0 %v754
    %901 = vmatpush1.msra.mxu0 %v753
    %902 = vmatprep.subr.mxu0 %v756
    %903 = vmatpush1.msra.mxu0 %v755
    %904 = vmatprep.subr.mxu0 %v758
    %905 = vmatpush1.msra.mxu0 %v757
    %906 = vmatprep.subr.mxu0 %v760
    %907 = vmatpush1.msra.mxu0 %v759
    %908 = vmatprep.subr.mxu0 %v762
    %909 = vmatpush1.msra.mxu0 %v761
    %910 = vmatprep.subr.mxu0 %v764
    %911 = vmatpush1.msra.mxu0 %v763
    %912 = vmatprep.subr.mxu0 %v766
    %913 = vmatpush1.msra.mxu0 %v765
    %914 = vmatprep.subr.mxu0 %v768
    %915 = vmatpush1.msra.mxu0 %v767
    %916 = vmatprep.mubr.f32.mxu0 %v640
    %917 = vmatmul.mubr.f32.gmra.mrb[0].mxu0 %v639
    %v918 = vpop.f32.mrb[0].mxu0
    %v919 = vadd.f32 %v848, %v918
    %v920 = vpop.f32.mrb[0].mxu0
    %v921 = vadd.f32 %v850, %v920
    %922 = vdwg.mxu0
    %v923 = vmax.f32 %v919, 0.0
    %v924 = vmax.f32 %v921, 0.0
    %v925 = vld [vmem:[%s9] sm:$0xff]
    %v926 = vld [vmem:[%s9 + $0x8] sm:$0xff]
    %v927 = vld [vmem:[%s9 + $0x10] sm:$0xff]
    %v928 = vld [vmem:[%s9 + $0x18] sm:$0xff]
    %v929 = vld [vmem:[%s9 + $0x20] sm:$0xff]
    %v930 = vld [vmem:[%s9 + $0x28] sm:$0xff]
    %v931 = vld [vmem:[%s9 + $0x30] sm:$0xff]
    %v932 = vld [vmem:[%s9 + $0x38] sm:$0xff]
    %v933 = vld [vmem:[%s9 + $0x40] sm:$0xff]
    %v934 = vld [vmem:[%s9 + $0x48] sm:$0xff]
    %v935 = vld [vmem:[%s9 + $0x50] sm:$0xff]
    %v936 = vld [vmem:[%s9 + $0x58] sm:$0xff]
    %v937 = vld [vmem:[%s9 + $0x60] sm:$0xff]
    %v938 = vld [vmem:[%s9 + $0x68] sm:$0xff]
    %v939 = vld [vmem:[%s9 + $0x70] sm:$0xff]
    %v940 = vld [vmem:[%s9 + $0x78] sm:$0xff]
    %v941 = vld [vmem:[%s9 + $0x80] sm:$0xff]
    %v942 = vld [vmem:[%s9 + $0x88] sm:$0xff]
    %v943 = vld [vmem:[%s9 + $0x90] sm:$0xff]
    %v944 = vld [vmem:[%s9 + $0x98] sm:$0xff]
    %v945 = vld [vmem:[%s9 + $0xa0] sm:$0xff]
    %v946 = vld [vmem:[%s9 + $0xa8] sm:$0xff]
    %v947 = vld [vmem:[%s9 + $0xb0] sm:$0xff]
    %v948 = vld [vmem:[%s9 + $0xb8] sm:$0xff]
    %v949 = vld [vmem:[%s9 + $0xc0] sm:$0xff]
    %v950 = vld [vmem:[%s9 + $0xc8] sm:$0xff]
    %v951 = vld [vmem:[%s9 + $0xd0] sm:$0xff]
    %v952 = vld [vmem:[%s9 + $0xd8] sm:$0xff]
    %v953 = vld [vmem:[%s9 + $0xe0] sm:$0xff]
    %v954 = vld [vmem:[%s9 + $0xe8] sm:$0xff]
    %v955 = vld [vmem:[%s9 + $0xf0] sm:$0xff]
    %v956 = vld [vmem:[%s9 + $0xf8] sm:$0xff]
    %v957 = vld [vmem:[%s10] sm:$0x1]
    %v959 = vlaneseq
    %v960 = vshrl.u32 %v959, 7
    %v961 = vsub.s32 0, %v960
    %v962 = vrot.slane %v957, %v961
    %964 = vmatprep.subr.mxu0 0.0
    %965 = vmatpush1.msra.mxu0 %v925
    %966 = vmatprep.subr.mxu0 0.0
    %967 = vmatpush1.msra.mxu0 %v926
    %968 = vmatprep.subr.mxu0 0.0
    %969 = vmatpush1.msra.mxu0 %v927
    %970 = vmatprep.subr.mxu0 0.0
    %971 = vmatpush1.msra.mxu0 %v928
    %972 = vmatprep.subr.mxu0 0.0
    %973 = vmatpush1.msra.mxu0 %v929
    %974 = vmatprep.subr.mxu0 0.0
    %975 = vmatpush1.msra.mxu0 %v930
    %976 = vmatprep.subr.mxu0 0.0
    %977 = vmatpush1.msra.mxu0 %v931
    %978 = vmatprep.subr.mxu0 0.0
    %979 = vmatpush1.msra.mxu0 %v932
    %980 = vmatprep.subr.mxu0 0.0
    %981 = vmatpush1.msra.mxu0 %v933
    %982 = vmatprep.subr.mxu0 0.0
    %983 = vmatpush1.msra.mxu0 %v934
    %984 = vmatprep.subr.mxu0 0.0
    %985 = vmatpush1.msra.mxu0 %v935
    %986 = vmatprep.subr.mxu0 0.0
    %987 = vmatpush1.msra.mxu0 %v936
    %988 = vmatprep.subr.mxu0 0.0
    %989 = vmatpush1.msra.mxu0 %v937
    %990 = vmatprep.subr.mxu0 0.0
    %991 = vmatpush1.msra.mxu0 %v938
    %992 = vmatprep.subr.mxu0 0.0
    %993 = vmatpush1.msra.mxu0 %v939
    %994 = vmatprep.subr.mxu0 0.0
    %995 = vmatpush1.msra.mxu0 %v940
    %996 = vmatprep.subr.mxu0 0.0
    %997 = vmatpush1.msra.mxu0 %v941
    %998 = vmatprep.subr.mxu0 0.0
    %999 = vmatpush1.msra.mxu0 %v942
    %1000 = vmatprep.subr.mxu0 0.0
    %1001 = vmatpush1.msra.mxu0 %v943
    %1002 = vmatprep.subr.mxu0 0.0
    %1003 = vmatpush1.msra.mxu0 %v944
    %1004 = vmatprep.subr.mxu0 0.0
    %1005 = vmatpush1.msra.mxu0 %v945
    %1006 = vmatprep.subr.mxu0 0.0
    %1007 = vmatpush1.msra.mxu0 %v946
    %1008 = vmatprep.subr.mxu0 0.0
    %1009 = vmatpush1.msra.mxu0 %v947
    %1010 = vmatprep.subr.mxu0 0.0
    %1011 = vmatpush1.msra.mxu0 %v948
    %1012 = vmatprep.subr.mxu0 0.0
    %1013 = vmatpush1.msra.mxu0 %v949
    %1014 = vmatprep.subr.mxu0 0.0
    %1015 = vmatpush1.msra.mxu0 %v950
    %1016 = vmatprep.subr.mxu0 0.0
    %1017 = vmatpush1.msra.mxu0 %v951
    %1018 = vmatprep.subr.mxu0 0.0
    %1019 = vmatpush1.msra.mxu0 %v952
    %1020 = vmatprep.subr.mxu0 0.0
    %1021 = vmatpush1.msra.mxu0 %v953
    %1022 = vmatprep.subr.mxu0 0.0
    %1023 = vmatpush1.msra.mxu0 %v954
    %1024 = vmatprep.subr.mxu0 0.0
    %1025 = vmatpush1.msra.mxu0 %v955
    %1026 = vmatprep.subr.mxu0 0.0
    %1027 = vmatpush1.msra.mxu0 %v956
    %1028 = vmatprep.mubr.f32.mxu0 %v924
    %1029 = vmatmul.mubr.f32.gmra.mrb[0].mxu0 %v923
    %v1030 = vpop.f32.mrb[0].mxu0
    %v1031 = vadd.f32 %v962, %v1030
    %v1032 = vpop.f32.mrb[0].mxu0
    %1033 = vdwg.mxu0
    %v1034 = vmax.f32 %v1031, 0.0
    %v1035 = vld [vmem:[%s11] sm:$0x1]
    %v1037 = vlaneseq
    %v1038 = vshrl.u32 %v1037, 7
    %v1039 = vsub.s32 0, %v1038
    %v1040 = vrot.slane %v1035, %v1039
    %v1042 = vmul.f32 %v1034, %v1040
    %vm1043 = vcmask 523264
    %v1044 = vsel %vm1043, %v1042, 0.0
    %1045 = vadd.xlane.f32.xlu0 %v1044
    %v1046 = vpop.xlane.xlu0 %1045
    %s1047 = sld [smem:[#allocation2]]
    %v1048 = vstv %s1047
    %v1049 = vadd.f32 %v1046, %v1048
    %v1050 = vld [vmem:[%s13] sm:$0x3f]
    %v1051 = vld [vmem:[%s14] sm:$0x1]
    %v1053 = vlaneseq
    %v1054 = vshrl.u32 %v1053, 7
    %v1055 = vsub.s32 0, %v1054
    %v1056 = vrot.slane %v1051, %v1055
    %v1058 = vmul.f32 %v1049, %v1056
    %v1060 = vsel %vm153, %v1050, 0
    %1062 = vmatprep.subr.mxu0 0.0
    %1063 = vmatpush1.msra.mxu0 %v1060
    %1064 = vmatprep.subr.mxu0 0.0
    %1065 = vmatpush1.msra.mxu0 0.0
    %1066 = vmatprep.subr.mxu0 0.0
    %1067 = vmatpush1.msra.mxu0 0.0
    %1068 = vmatprep.subr.mxu0 0.0
    %1069 = vmatpush1.msra.mxu0 0.0
    %1070 = vmatprep.subr.mxu0 0.0
    %1071 = vmatpush1.msra.mxu0 0.0
    %1072 = vmatprep.subr.mxu0 0.0
    %1073 = vmatpush1.msra.mxu0 0.0
    %1074 = vmatprep.subr.mxu0 0.0
    %1075 = vmatpush1.msra.mxu0 0.0
    %1076 = vmatprep.subr.mxu0 0.0
    %1077 = vmatpush1.msra.mxu0 0.0
    %1078 = vmatprep.subr.mxu0 0.0
    %1079 = vmatpush1.msra.mxu0 0.0
    %1080 = vmatprep.subr.mxu0 0.0
    %1081 = vmatpush1.msra.mxu0 0.0
    %1082 = vmatprep.subr.mxu0 0.0
    %1083 = vmatpush1.msra.mxu0 0.0
    %1084 = vmatprep.subr.mxu0 0.0
    %1085 = vmatpush1.msra.mxu0 0.0
    %1086 = vmatprep.subr.mxu0 0.0
    %1087 = vmatpush1.msra.mxu0 0.0
    %1088 = vmatprep.subr.mxu0 0.0
    %1089 = vmatpush1.msra.mxu0 0.0
    %1090 = vmatprep.subr.mxu0 0.0
    %1091 = vmatpush1.msra.mxu0 0.0
    %1092 = vmatprep.subr.mxu0 0.0
    %1093 = vmatpush1.msra.mxu0 0.0
    %1094 = vmatprep.subr.mxu0 0.0
    %1095 = vmatpush1.msra.mxu0 0.0
    %1096 = vmatprep.subr.mxu0 0.0
    %1097 = vmatpush1.msra.mxu0 0.0
    %1098 = vmatprep.subr.mxu0 0.0
    %1099 = vmatpush1.msra.mxu0 0.0
    %1100 = vmatprep.subr.mxu0 0.0
    %1101 = vmatpush1.msra.mxu0 0.0
    %1102 = vmatprep.subr.mxu0 0.0
    %1103 = vmatpush1.msra.mxu0 0.0
    %1104 = vmatprep.subr.mxu0 0.0
    %1105 = vmatpush1.msra.mxu0 0.0
    %1106 = vmatprep.subr.mxu0 0.0
    %1107 = vmatpush1.msra.mxu0 0.0
    %1108 = vmatprep.subr.mxu0 0.0
    %1109 = vmatpush1.msra.mxu0 0.0
    %1110 = vmatprep.subr.mxu0 0.0
    %1111 = vmatpush1.msra.mxu0 0.0
    %1112 = vmatprep.subr.mxu0 0.0
    %1113 = vmatpush1.msra.mxu0 0.0
    %1114 = vmatprep.subr.mxu0 0.0
    %1115 = vmatpush1.msra.mxu0 0.0
    %1116 = vmatprep.subr.mxu0 0.0
    %1117 = vmatpush1.msra.mxu0 0.0
    %1118 = vmatprep.subr.mxu0 0.0
    %1119 = vmatpush1.msra.mxu0 0.0
    %1120 = vmatprep.subr.mxu0 0.0
    %1121 = vmatpush1.msra.mxu0 0.0
    %1122 = vmatprep.subr.mxu0 0.0
    %1123 = vmatpush1.msra.mxu0 0.0
    %1124 = vmatprep.subr.mxu0 0.0
    %1125 = vmatpush1.msra.mxu0 0.0
    %1126 = vmatprep.mubr.f32.mxu0 0.0
    %1127 = vmatmul.mubr.f32.gmra.mrb[0].mxu0 %v151
    %v1128 = vpop.f32.mrb[0].mxu0
    %v1129 = vadd.f32 %v1058, %v1128
    %v1130 = vpop.f32.mrb[0].mxu0
    %1131 = vdwg.mxu0
    %v1132 = vld [vmem:[%s15] sm:$0x1]
    %v1134 = vlaneseq
    %v1135 = vshrl.u32 %v1134, 7
    %v1136 = vsub.s32 0, %v1135
    %v1137 = vrot.slane %v1132, %v1136
    %v1139 = vadd.f32 %v1129, %v1137
    %v1140 = vmax.f32 %v1139, 0.0
    %v1141 = vld [vmem:[%s16] sm:$0xff]
    %v1142 = vld [vmem:[%s16 + $0x8] sm:$0xff]
    %v1143 = vld [vmem:[%s16 + $0x10] sm:$0xff]
    %v1144 = vld [vmem:[%s16 + $0x18] sm:$0xff]
    %v1145 = vld [vmem:[%s16 + $0x20] sm:$0xff]
    %v1146 = vld [vmem:[%s16 + $0x28] sm:$0xff]
    %v1147 = vld [vmem:[%s16 + $0x30] sm:$0xff]
    %v1148 = vld [vmem:[%s16 + $0x38] sm:$0xff]
    %v1149 = vld [vmem:[%s16 + $0x40] sm:$0xff]
    %v1150 = vld [vmem:[%s16 + $0x48] sm:$0xff]
    %v1151 = vld [vmem:[%s16 + $0x50] sm:$0xff]
    %v1152 = vld [vmem:[%s16 + $0x58] sm:$0xff]
    %v1153 = vld [vmem:[%s16 + $0x60] sm:$0xff]
    %v1154 = vld [vmem:[%s16 + $0x68] sm:$0xff]
    %v1155 = vld [vmem:[%s16 + $0x70] sm:$0xff]
    %v1156 = vld [vmem:[%s16 + $0x78] sm:$0xff]
    %v1157 = vld [vmem:[%s16 + $0x80] sm:$0xff]
    %v1158 = vld [vmem:[%s16 + $0x88] sm:$0xff]
    %v1159 = vld [vmem:[%s16 + $0x90] sm:$0xff]
    %v1160 = vld [vmem:[%s16 + $0x98] sm:$0xff]
    %v1161 = vld [vmem:[%s16 + $0xa0] sm:$0xff]
    %v1162 = vld [vmem:[%s16 + $0xa8] sm:$0xff]
    %v1163 = vld [vmem:[%s16 + $0xb0] sm:$0xff]
    %v1164 = vld [vmem:[%s16 + $0xb8] sm:$0xff]
    %v1165 = vld [vmem:[%s16 + $0xc0] sm:$0xff]
    %v1166 = vld [vmem:[%s16 + $0xc8] sm:$0xff]
    %v1167 = vld [vmem:[%s16 + $0xd0] sm:$0xff]
    %v1168 = vld [vmem:[%s16 + $0xd8] sm:$0xff]
    %v1169 = vld [vmem:[%s16 + $0xe0] sm:$0xff]
    %v1170 = vld [vmem:[%s16 + $0xe8] sm:$0xff]
    %v1171 = vld [vmem:[%s16 + $0xf0] sm:$0xff]
    %v1172 = vld [vmem:[%s16 + $0xf8] sm:$0xff]
    %v1173 = vld [vmem:[%s17] sm:$0x3]
    %v1175 = vlaneseq
    %v1176 = vshrl.u32 %v1175, 7
    %v1177 = vsub.s32 0, %v1176
    %v1178 = vrot.slane %v1173, %v1177
    %v1179 = vlaneseq
    %v1180 = vshrl.u32 %v1179, 7
    %v1181 = vsub.s32 1, %v1180
    %v1182 = vrot.slane %v1173, %v1181
    %1185 = vmatprep.subr.mxu0 %v1142
    %1186 = vmatpush1.msra.mxu0 %v1141
    %1187 = vmatprep.subr.mxu0 %v1144
    %1188 = vmatpush1.msra.mxu0 %v1143
    %1189 = vmatprep.subr.mxu0 %v1146
    %1190 = vmatpush1.msra.mxu0 %v1145
    %1191 = vmatprep.subr.mxu0 %v1148
    %1192 = vmatpush1.msra.mxu0 %v1147
    %1193 = vmatprep.subr.mxu0 %v1150
    %1194 = vmatpush1.msra.mxu0 %v1149
    %1195 = vmatprep.subr.mxu0 %v1152
    %1196 = vmatpush1.msra.mxu0 %v1151
    %1197 = vmatprep.subr.mxu0 %v1154
    %1198 = vmatpush1.msra.mxu0 %v1153
    %1199 = vmatprep.subr.mxu0 %v1156
    %1200 = vmatpush1.msra.mxu0 %v1155
    %1201 = vmatprep.subr.mxu0 %v1158
    %1202 = vmatpush1.msra.mxu0 %v1157
    %1203 = vmatprep.subr.mxu0 %v1160
    %1204 = vmatpush1.msra.mxu0 %v1159
    %1205 = vmatprep.subr.mxu0 %v1162
    %1206 = vmatpush1.msra.mxu0 %v1161
    %1207 = vmatprep.subr.mxu0 %v1164
    %1208 = vmatpush1.msra.mxu0 %v1163
    %1209 = vmatprep.subr.mxu0 %v1166
    %1210 = vmatpush1.msra.mxu0 %v1165
    %1211 = vmatprep.subr.mxu0 %v1168
    %1212 = vmatpush1.msra.mxu0 %v1167
    %1213 = vmatprep.subr.mxu0 %v1170
    %1214 = vmatpush1.msra.mxu0 %v1169
    %1215 = vmatprep.subr.mxu0 %v1172
    %1216 = vmatpush1.msra.mxu0 %v1171
    %1217 = vmatprep.subr.mxu0 0.0
    %1218 = vmatpush1.msra.mxu0 0.0
    %1219 = vmatprep.subr.mxu0 0.0
    %1220 = vmatpush1.msra.mxu0 0.0
    %1221 = vmatprep.subr.mxu0 0.0
    %1222 = vmatpush1.msra.mxu0 0.0
    %1223 = vmatprep.subr.mxu0 0.0
    %1224 = vmatpush1.msra.mxu0 0.0
    %1225 = vmatprep.subr.mxu0 0.0
    %1226 = vmatpush1.msra.mxu0 0.0
    %1227 = vmatprep.subr.mxu0 0.0
    %1228 = vmatpush1.msra.mxu0 0.0
    %1229 = vmatprep.subr.mxu0 0.0
    %1230 = vmatpush1.msra.mxu0 0.0
    %1231 = vmatprep.subr.mxu0 0.0
    %1232 = vmatpush1.msra.mxu0 0.0
    %1233 = vmatprep.subr.mxu0 0.0
    %1234 = vmatpush1.msra.mxu0 0.0
    %1235 = vmatprep.subr.mxu0 0.0
    %1236 = vmatpush1.msra.mxu0 0.0
    %1237 = vmatprep.subr.mxu0 0.0
    %1238 = vmatpush1.msra.mxu0 0.0
    %1239 = vmatprep.subr.mxu0 0.0
    %1240 = vmatpush1.msra.mxu0 0.0
    %1241 = vmatprep.subr.mxu0 0.0
    %1242 = vmatpush1.msra.mxu0 0.0
    %1243 = vmatprep.subr.mxu0 0.0
    %1244 = vmatpush1.msra.mxu0 0.0
    %1245 = vmatprep.subr.mxu0 0.0
    %1246 = vmatpush1.msra.mxu0 0.0
    %1247 = vmatprep.subr.mxu0 0.0
    %1248 = vmatpush1.msra.mxu0 0.0
    %1249 = vmatprep.mubr.f32.mxu0 0.0
    %1250 = vmatmul.mubr.f32.gmra.mrb[0].mxu0 %v1140
    %v1251 = vpop.f32.mrb[0].mxu0
    %v1252 = vadd.f32 %v1178, %v1251
    %v1253 = vpop.f32.mrb[0].mxu0
    %v1254 = vadd.f32 %v1182, %v1253
    %1255 = vdwg.mxu0
    %v1256 = vmax.f32 %v1252, 0.0
    %v1257 = vmax.f32 %v1254, 0.0
    %v1258 = vld [vmem:[#allocation8] sm:$0xff]
    %v1259 = vld [vmem:[#allocation8 + $0x8] sm:$0xff]
    %v1260 = vld [vmem:[#allocation8 + $0x10] sm:$0xff]
    %v1261 = vld [vmem:[#allocation8 + $0x18] sm:$0xff]
    %v1262 = vld [vmem:[#allocation8 + $0x20] sm:$0xff]
    %v1263 = vld [vmem:[#allocation8 + $0x28] sm:$0xff]
    %v1264 = vld [vmem:[#allocation8 + $0x30] sm:$0xff]
    %v1265 = vld [vmem:[#allocation8 + $0x38] sm:$0xff]
    %v1266 = vld [vmem:[#allocation8 + $0x40] sm:$0xff]
    %v1267 = vld [vmem:[#allocation8 + $0x48] sm:$0xff]
    %v1268 = vld [vmem:[#allocation8 + $0x50] sm:$0xff]
    %v1269 = vld [vmem:[#allocation8 + $0x58] sm:$0xff]
    %v1270 = vld [vmem:[#allocation8 + $0x60] sm:$0xff]
    %v1271 = vld [vmem:[#allocation8 + $0x68] sm:$0xff]
    %v1272 = vld [vmem:[#allocation8 + $0x70] sm:$0xff]
    %v1273 = vld [vmem:[#allocation8 + $0x78] sm:$0xff]
    %v1274 = vld [vmem:[#allocation8 + $0x80] sm:$0xff]
    %v1275 = vld [vmem:[#allocation8 + $0x88] sm:$0xff]
    %v1276 = vld [vmem:[#allocation8 + $0x90] sm:$0xff]
    %v1277 = vld [vmem:[#allocation8 + $0x98] sm:$0xff]
    %v1278 = vld [vmem:[#allocation8 + $0xa0] sm:$0xff]
    %v1279 = vld [vmem:[#allocation8 + $0xa8] sm:$0xff]
    %v1280 = vld [vmem:[#allocation8 + $0xb0] sm:$0xff]
    %v1281 = vld [vmem:[#allocation8 + $0xb8] sm:$0xff]
    %v1282 = vld [vmem:[#allocation8 + $0xc0] sm:$0xff]
    %v1283 = vld [vmem:[#allocation8 + $0xc8] sm:$0xff]
    %v1284 = vld [vmem:[#allocation8 + $0xd0] sm:$0xff]
    %v1285 = vld [vmem:[#allocation8 + $0xd8] sm:$0xff]
    %v1286 = vld [vmem:[#allocation8 + $0xe0] sm:$0xff]
    %v1287 = vld [vmem:[#allocation8 + $0xe8] sm:$0xff]
    %v1288 = vld [vmem:[#allocation8 + $0xf0] sm:$0xff]
    %v1289 = vld [vmem:[#allocation8 + $0xf8] sm:$0xff]
    %v1290 = vld [vmem:[#allocation8 + $0x100] sm:$0xff]
    %v1291 = vld [vmem:[#allocation8 + $0x108] sm:$0xff]
    %v1292 = vld [vmem:[#allocation8 + $0x110] sm:$0xff]
    %v1293 = vld [vmem:[#allocation8 + $0x118] sm:$0xff]
    %v1294 = vld [vmem:[#allocation8 + $0x120] sm:$0xff]
    %v1295 = vld [vmem:[#allocation8 + $0x128] sm:$0xff]
    %v1296 = vld [vmem:[#allocation8 + $0x130] sm:$0xff]
    %v1297 = vld [vmem:[#allocation8 + $0x138] sm:$0xff]
    %v1298 = vld [vmem:[#allocation8 + $0x140] sm:$0xff]
    %v1299 = vld [vmem:[#allocation8 + $0x148] sm:$0xff]
    %v1300 = vld [vmem:[#allocation8 + $0x150] sm:$0xff]
    %v1301 = vld [vmem:[#allocation8 + $0x158] sm:$0xff]
    %v1302 = vld [vmem:[#allocation8 + $0x160] sm:$0xff]
    %v1303 = vld [vmem:[#allocation8 + $0x168] sm:$0xff]
    %v1304 = vld [vmem:[#allocation8 + $0x170] sm:$0xff]
    %v1305 = vld [vmem:[#allocation8 + $0x178] sm:$0xff]
    %v1306 = vld [vmem:[#allocation8 + $0x180] sm:$0xff]
    %v1307 = vld [vmem:[#allocation8 + $0x188] sm:$0xff]
    %v1308 = vld [vmem:[#allocation8 + $0x190] sm:$0xff]
    %v1309 = vld [vmem:[#allocation8 + $0x198] sm:$0xff]
    %v1310 = vld [vmem:[#allocation8 + $0x1a0] sm:$0xff]
    %v1311 = vld [vmem:[#allocation8 + $0x1a8] sm:$0xff]
    %v1312 = vld [vmem:[#allocation8 + $0x1b0] sm:$0xff]
    %v1313 = vld [vmem:[#allocation8 + $0x1b8] sm:$0xff]
    %v1314 = vld [vmem:[#allocation8 + $0x1c0] sm:$0xff]
    %v1315 = vld [vmem:[#allocation8 + $0x1c8] sm:$0xff]
    %v1316 = vld [vmem:[#allocation8 + $0x1d0] sm:$0xff]
    %v1317 = vld [vmem:[#allocation8 + $0x1d8] sm:$0xff]
    %v1318 = vld [vmem:[#allocation8 + $0x1e0] sm:$0xff]
    %v1319 = vld [vmem:[#allocation8 + $0x1e8] sm:$0xff]
    %v1320 = vld [vmem:[#allocation8 + $0x1f0] sm:$0xff]
    %v1321 = vld [vmem:[#allocation8 + $0x1f8] sm:$0xff]
    %v1322 = vld [vmem:[#allocation8 + $0x200] sm:$0xff]
    %v1323 = vld [vmem:[#allocation8 + $0x208] sm:$0xff]
    %v1324 = vld [vmem:[#allocation8 + $0x210] sm:$0xff]
    %v1325 = vld [vmem:[#allocation8 + $0x218] sm:$0xff]
    %v1326 = vld [vmem:[#allocation8 + $0x220] sm:$0xff]
    %v1327 = vld [vmem:[#allocation8 + $0x228] sm:$0xff]
    %v1328 = vld [vmem:[#allocation8 + $0x230] sm:$0xff]
    %v1329 = vld [vmem:[#allocation8 + $0x238] sm:$0xff]
    %v1330 = vld [vmem:[#allocation8 + $0x240] sm:$0xff]
    %v1331 = vld [vmem:[#allocation8 + $0x248] sm:$0xff]
    %v1332 = vld [vmem:[#allocation8 + $0x250] sm:$0xff]
    %v1333 = vld [vmem:[#allocation8 + $0x258] sm:$0xff]
    %v1334 = vld [vmem:[#allocation8 + $0x260] sm:$0xff]
    %v1335 = vld [vmem:[#allocation8 + $0x268] sm:$0xff]
    %v1336 = vld [vmem:[#allocation8 + $0x270] sm:$0xff]
    %v1337 = vld [vmem:[#allocation8 + $0x278] sm:$0xff]
    %v1338 = vld [vmem:[#allocation8 + $0x280] sm:$0xff]
    %v1339 = vld [vmem:[#allocation8 + $0x288] sm:$0xff]
    %v1340 = vld [vmem:[#allocation8 + $0x290] sm:$0xff]
    %v1341 = vld [vmem:[#allocation8 + $0x298] sm:$0xff]
    %v1342 = vld [vmem:[#allocation8 + $0x2a0] sm:$0xff]
    %v1343 = vld [vmem:[#allocation8 + $0x2a8] sm:$0xff]
    %v1344 = vld [vmem:[#allocation8 + $0x2b0] sm:$0xff]
    %v1345 = vld [vmem:[#allocation8 + $0x2b8] sm:$0xff]
    %v1346 = vld [vmem:[#allocation8 + $0x2c0] sm:$0xff]
    %v1347 = vld [vmem:[#allocation8 + $0x2c8] sm:$0xff]
    %v1348 = vld [vmem:[#allocation8 + $0x2d0] sm:$0xff]
    %v1349 = vld [vmem:[#allocation8 + $0x2d8] sm:$0xff]
    %v1350 = vld [vmem:[#allocation8 + $0x2e0] sm:$0xff]
    %v1351 = vld [vmem:[#allocation8 + $0x2e8] sm:$0xff]
    %v1352 = vld [vmem:[#allocation8 + $0x2f0] sm:$0xff]
    %v1353 = vld [vmem:[#allocation8 + $0x2f8] sm:$0xff]
    %v1354 = vld [vmem:[#allocation8 + $0x300] sm:$0xff]
    %v1355 = vld [vmem:[#allocation8 + $0x308] sm:$0xff]
    %v1356 = vld [vmem:[#allocation8 + $0x310] sm:$0xff]
    %v1357 = vld [vmem:[#allocation8 + $0x318] sm:$0xff]
    %v1358 = vld [vmem:[#allocation8 + $0x320] sm:$0xff]
    %v1359 = vld [vmem:[#allocation8 + $0x328] sm:$0xff]
    %v1360 = vld [vmem:[#allocation8 + $0x330] sm:$0xff]
    %v1361 = vld [vmem:[#allocation8 + $0x338] sm:$0xff]
    %v1362 = vld [vmem:[#allocation8 + $0x340] sm:$0xff]
    %v1363 = vld [vmem:[#allocation8 + $0x348] sm:$0xff]
    %v1364 = vld [vmem:[#allocation8 + $0x350] sm:$0xff]
    %v1365 = vld [vmem:[#allocation8 + $0x358] sm:$0xff]
    %v1366 = vld [vmem:[#allocation8 + $0x360] sm:$0xff]
    %v1367 = vld [vmem:[#allocation8 + $0x368] sm:$0xff]
    %v1368 = vld [vmem:[#allocation8 + $0x370] sm:$0xff]
    %v1369 = vld [vmem:[#allocation8 + $0x378] sm:$0xff]
    %v1370 = vld [vmem:[#allocation8 + $0x380] sm:$0xff]
    %v1371 = vld [vmem:[#allocation8 + $0x388] sm:$0xff]
    %v1372 = vld [vmem:[#allocation8 + $0x390] sm:$0xff]
    %v1373 = vld [vmem:[#allocation8 + $0x398] sm:$0xff]
    %v1374 = vld [vmem:[#allocation8 + $0x3a0] sm:$0xff]
    %v1375 = vld [vmem:[#allocation8 + $0x3a8] sm:$0xff]
    %v1376 = vld [vmem:[#allocation8 + $0x3b0] sm:$0xff]
    %v1377 = vld [vmem:[#allocation8 + $0x3b8] sm:$0xff]
    %v1378 = vld [vmem:[#allocation8 + $0x3c0] sm:$0xff]
    %v1379 = vld [vmem:[#allocation8 + $0x3c8] sm:$0xff]
    %v1380 = vld [vmem:[#allocation8 + $0x3d0] sm:$0xff]
    %v1381 = vld [vmem:[#allocation8 + $0x3d8] sm:$0xff]
    %v1382 = vld [vmem:[#allocation8 + $0x3e0] sm:$0xff]
    %v1383 = vld [vmem:[#allocation8 + $0x3e8] sm:$0xff]
    %v1384 = vld [vmem:[#allocation8 + $0x3f0] sm:$0xff]
    %v1385 = vld [vmem:[#allocation8 + $0x3f8] sm:$0xff]
    %v1386 = vld [vmem:[%s19] sm:$0xf]
    %v1388 = vlaneseq
    %v1389 = vshrl.u32 %v1388, 7
    %v1390 = vsub.s32 0, %v1389
    %v1391 = vrot.slane %v1386, %v1390
    %v1392 = vlaneseq
    %v1393 = vshrl.u32 %v1392, 7
    %v1394 = vsub.s32 1, %v1393
    %v1395 = vrot.slane %v1386, %v1394
    %v1396 = vlaneseq
    %v1397 = vshrl.u32 %v1396, 7
    %v1398 = vsub.s32 2, %v1397
    %v1399 = vrot.slane %v1386, %v1398
    %v1400 = vlaneseq
    %v1401 = vshrl.u32 %v1400, 7
    %v1402 = vsub.s32 3, %v1401
    %v1403 = vrot.slane %v1386, %v1402
    %1408 = vmatprep.subr.mxu0 %v1259
    %1409 = vmatpush1.msra.mxu0 %v1258
    %1410 = vmatprep.subr.mxu0 %v1263
    %1411 = vmatpush1.msra.mxu0 %v1262
    %1412 = vmatprep.subr.mxu0 %v1267
    %1413 = vmatpush1.msra.mxu0 %v1266
    %1414 = vmatprep.subr.mxu0 %v1271
    %1415 = vmatpush1.msra.mxu0 %v1270
    %1416 = vmatprep.subr.mxu0 %v1275
    %1417 = vmatpush1.msra.mxu0 %v1274
    %1418 = vmatprep.subr.mxu0 %v1279
    %1419 = vmatpush1.msra.mxu0 %v1278
    %1420 = vmatprep.subr.mxu0 %v1283
    %1421 = vmatpush1.msra.mxu0 %v1282
    %1422 = vmatprep.subr.mxu0 %v1287
    %1423 = vmatpush1.msra.mxu0 %v1286
    %1424 = vmatprep.subr.mxu0 %v1291
    %1425 = vmatpush1.msra.mxu0 %v1290
    %1426 = vmatprep.subr.mxu0 %v1295
    %1427 = vmatpush1.msra.mxu0 %v1294
    %1428 = vmatprep.subr.mxu0 %v1299
    %1429 = vmatpush1.msra.mxu0 %v1298
    %1430 = vmatprep.subr.mxu0 %v1303
    %1431 = vmatpush1.msra.mxu0 %v1302
    %1432 = vmatprep.subr.mxu0 %v1307
    %1433 = vmatpush1.msra.mxu0 %v1306
    %1434 = vmatprep.subr.mxu0 %v1311
    %1435 = vmatpush1.msra.mxu0 %v1310
    %1436 = vmatprep.subr.mxu0 %v1315
    %1437 = vmatpush1.msra.mxu0 %v1314
    %1438 = vmatprep.subr.mxu0 %v1319
    %1439 = vmatpush1.msra.mxu0 %v1318
    %1440 = vmatprep.subr.mxu0 %v1323
    %1441 = vmatpush1.msra.mxu0 %v1322
    %1442 = vmatprep.subr.mxu0 %v1327
    %1443 = vmatpush1.msra.mxu0 %v1326
    %1444 = vmatprep.subr.mxu0 %v1331
    %1445 = vmatpush1.msra.mxu0 %v1330
    %1446 = vmatprep.subr.mxu0 %v1335
    %1447 = vmatpush1.msra.mxu0 %v1334
    %1448 = vmatprep.subr.mxu0 %v1339
    %1449 = vmatpush1.msra.mxu0 %v1338
    %1450 = vmatprep.subr.mxu0 %v1343
    %1451 = vmatpush1.msra.mxu0 %v1342
    %1452 = vmatprep.subr.mxu0 %v1347
    %1453 = vmatpush1.msra.mxu0 %v1346
    %1454 = vmatprep.subr.mxu0 %v1351
    %1455 = vmatpush1.msra.mxu0 %v1350
    %1456 = vmatprep.subr.mxu0 %v1355
    %1457 = vmatpush1.msra.mxu0 %v1354
    %1458 = vmatprep.subr.mxu0 %v1359
    %1459 = vmatpush1.msra.mxu0 %v1358
    %1460 = vmatprep.subr.mxu0 %v1363
    %1461 = vmatpush1.msra.mxu0 %v1362
    %1462 = vmatprep.subr.mxu0 %v1367
    %1463 = vmatpush1.msra.mxu0 %v1366
    %1464 = vmatprep.subr.mxu0 %v1371
    %1465 = vmatpush1.msra.mxu0 %v1370
    %1466 = vmatprep.subr.mxu0 %v1375
    %1467 = vmatpush1.msra.mxu0 %v1374
    %1468 = vmatprep.subr.mxu0 %v1379
    %1469 = vmatpush1.msra.mxu0 %v1378
    %1470 = vmatprep.subr.mxu0 %v1383
    %1471 = vmatpush1.msra.mxu0 %v1382
    %1472 = vmatprep.mubr.f32.mxu0 %v1257
    %1473 = vmatmul.mubr.f32.gmra.mrb[0].mxu0 %v1256
    %v1474 = vpop.f32.mrb[0].mxu0
    %v1475 = vadd.f32 %v1391, %v1474
    %v1476 = vpop.f32.mrb[0].mxu0
    %v1477 = vadd.f32 %v1395, %v1476
    %1478 = vdwg.mxu0
    %1479 = vmatprep.subr.mxu0 %v1261
    %1480 = vmatpush1.msra.mxu0 %v1260
    %1481 = vmatprep.subr.mxu0 %v1265
    %1482 = vmatpush1.msra.mxu0 %v1264
    %1483 = vmatprep.subr.mxu0 %v1269
    %1484 = vmatpush1.msra.mxu0 %v1268
    %1485 = vmatprep.subr.mxu0 %v1273
    %1486 = vmatpush1.msra.mxu0 %v1272
    %1487 = vmatprep.subr.mxu0 %v1277
    %1488 = vmatpush1.msra.mxu0 %v1276
    %1489 = vmatprep.subr.mxu0 %v1281
    %1490 = vmatpush1.msra.mxu0 %v1280
    %1491 = vmatprep.subr.mxu0 %v1285
    %1492 = vmatpush1.msra.mxu0 %v1284
    %1493 = vmatprep.subr.mxu0 %v1289
    %1494 = vmatpush1.msra.mxu0 %v1288
    %1495 = vmatprep.subr.mxu0 %v1293
    %1496 = vmatpush1.msra.mxu0 %v1292
    %1497 = vmatprep.subr.mxu0 %v1297
    %1498 = vmatpush1.msra.mxu0 %v1296
    %1499 = vmatprep.subr.mxu0 %v1301
    %1500 = vmatpush1.msra.mxu0 %v1300
    %1501 = vmatprep.subr.mxu0 %v1305
    %1502 = vmatpush1.msra.mxu0 %v1304
    %1503 = vmatprep.subr.mxu0 %v1309
    %1504 = vmatpush1.msra.mxu0 %v1308
    %1505 = vmatprep.subr.mxu0 %v1313
    %1506 = vmatpush1.msra.mxu0 %v1312
    %1507 = vmatprep.subr.mxu0 %v1317
    %1508 = vmatpush1.msra.mxu0 %v1316
    %1509 = vmatprep.subr.mxu0 %v1321
    %1510 = vmatpush1.msra.mxu0 %v1320
    %1511 = vmatprep.subr.mxu0 %v1325
    %1512 = vmatpush1.msra.mxu0 %v1324
    %1513 = vmatprep.subr.mxu0 %v1329
    %1514 = vmatpush1.msra.mxu0 %v1328
    %1515 = vmatprep.subr.mxu0 %v1333
    %1516 = vmatpush1.msra.mxu0 %v1332
    %1517 = vmatprep.subr.mxu0 %v1337
    %1518 = vmatpush1.msra.mxu0 %v1336
    %1519 = vmatprep.subr.mxu0 %v1341
    %1520 = vmatpush1.msra.mxu0 %v1340
    %1521 = vmatprep.subr.mxu0 %v1345
    %1522 = vmatpush1.msra.mxu0 %v1344
    %1523 = vmatprep.subr.mxu0 %v1349
    %1524 = vmatpush1.msra.mxu0 %v1348
    %1525 = vmatprep.subr.mxu0 %v1353
    %1526 = vmatpush1.msra.mxu0 %v1352
    %1527 = vmatprep.subr.mxu0 %v1357
    %1528 = vmatpush1.msra.mxu0 %v1356
    %1529 = vmatprep.subr.mxu0 %v1361
    %1530 = vmatpush1.msra.mxu0 %v1360
    %1531 = vmatprep.subr.mxu0 %v1365
    %1532 = vmatpush1.msra.mxu0 %v1364
    %1533 = vmatprep.subr.mxu0 %v1369
    %1534 = vmatpush1.msra.mxu0 %v1368
    %1535 = vmatprep.subr.mxu0 %v1373
    %1536 = vmatpush1.msra.mxu0 %v1372
    %1537 = vmatprep.subr.mxu0 %v1377
    %1538 = vmatpush1.msra.mxu0 %v1376
    %1539 = vmatprep.subr.mxu0 %v1381
    %1540 = vmatpush1.msra.mxu0 %v1380
    %1541 = vmatprep.subr.mxu0 %v1385
    %1542 = vmatpush1.msra.mxu0 %v1384
    %1543 = vmatprep.mubr.f32.mxu0 %v1257
    %1544 = vmatmul.mubr.f32.gmra.mrb[0].mxu0 %v1256
    %v1545 = vpop.f32.mrb[0].mxu0
    %v1546 = vadd.f32 %v1399, %v1545
    %v1547 = vpop.f32.mrb[0].mxu0
    %v1548 = vadd.f32 %v1403, %v1547
    %1549 = vdwg.mxu0
    %v1550 = vmax.f32 %v1475, 0.0
    %v1551 = vmax.f32 %v1477, 0.0
    %v1552 = vmax.f32 %v1546, 0.0
    %v1553 = vmax.f32 %v1548, 0.0
    %v1554 = vld [vmem:[#allocation9] sm:$0xff]
    %v1555 = vld [vmem:[#allocation9 + $0x8] sm:$0xff]
    %v1556 = vld [vmem:[#allocation9 + $0x10] sm:$0xff]
    %v1557 = vld [vmem:[#allocation9 + $0x18] sm:$0xff]
    %v1558 = vld [vmem:[#allocation9 + $0x20] sm:$0xff]
    %v1559 = vld [vmem:[#allocation9 + $0x28] sm:$0xff]
    %v1560 = vld [vmem:[#allocation9 + $0x30] sm:$0xff]
    %v1561 = vld [vmem:[#allocation9 + $0x38] sm:$0xff]
    %v1562 = vld [vmem:[#allocation9 + $0x40] sm:$0xff]
    %v1563 = vld [vmem:[#allocation9 + $0x48] sm:$0xff]
    %v1564 = vld [vmem:[#allocation9 + $0x50] sm:$0xff]
    %v1565 = vld [vmem:[#allocation9 + $0x58] sm:$0xff]
    %v1566 = vld [vmem:[#allocation9 + $0x60] sm:$0xff]
    %v1567 = vld [vmem:[#allocation9 + $0x68] sm:$0xff]
    %v1568 = vld [vmem:[#allocation9 + $0x70] sm:$0xff]
    %v1569 = vld [vmem:[#allocation9 + $0x78] sm:$0xff]
    %v1570 = vld [vmem:[#allocation9 + $0x80] sm:$0xff]
    %v1571 = vld [vmem:[#allocation9 + $0x88] sm:$0xff]
    %v1572 = vld [vmem:[#allocation9 + $0x90] sm:$0xff]
    %v1573 = vld [vmem:[#allocation9 + $0x98] sm:$0xff]
    %v1574 = vld [vmem:[#allocation9 + $0xa0] sm:$0xff]
    %v1575 = vld [vmem:[#allocation9 + $0xa8] sm:$0xff]
    %v1576 = vld [vmem:[#allocation9 + $0xb0] sm:$0xff]
    %v1577 = vld [vmem:[#allocation9 + $0xb8] sm:$0xff]
    %v1578 = vld [vmem:[#allocation9 + $0xc0] sm:$0xff]
    %v1579 = vld [vmem:[#allocation9 + $0xc8] sm:$0xff]
    %v1580 = vld [vmem:[#allocation9 + $0xd0] sm:$0xff]
    %v1581 = vld [vmem:[#allocation9 + $0xd8] sm:$0xff]
    %v1582 = vld [vmem:[#allocation9 + $0xe0] sm:$0xff]
    %v1583 = vld [vmem:[#allocation9 + $0xe8] sm:$0xff]
    %v1584 = vld [vmem:[#allocation9 + $0xf0] sm:$0xff]
    %v1585 = vld [vmem:[#allocation9 + $0xf8] sm:$0xff]
    %v1586 = vld [vmem:[#allocation9 + $0x100] sm:$0xff]
    %v1587 = vld [vmem:[#allocation9 + $0x108] sm:$0xff]
    %v1588 = vld [vmem:[#allocation9 + $0x110] sm:$0xff]
    %v1589 = vld [vmem:[#allocation9 + $0x118] sm:$0xff]
    %v1590 = vld [vmem:[#allocation9 + $0x120] sm:$0xff]
    %v1591 = vld [vmem:[#allocation9 + $0x128] sm:$0xff]
    %v1592 = vld [vmem:[#allocation9 + $0x130] sm:$0xff]
    %v1593 = vld [vmem:[#allocation9 + $0x138] sm:$0xff]
    %v1594 = vld [vmem:[#allocation9 + $0x140] sm:$0xff]
    %v1595 = vld [vmem:[#allocation9 + $0x148] sm:$0xff]
    %v1596 = vld [vmem:[#allocation9 + $0x150] sm:$0xff]
    %v1597 = vld [vmem:[#allocation9 + $0x158] sm:$0xff]
    %v1598 = vld [vmem:[#allocation9 + $0x160] sm:$0xff]
    %v1599 = vld [vmem:[#allocation9 + $0x168] sm:$0xff]
    %v1600 = vld [vmem:[#allocation9 + $0x170] sm:$0xff]
    %v1601 = vld [vmem:[#allocation9 + $0x178] sm:$0xff]
    %v1602 = vld [vmem:[#allocation9 + $0x180] sm:$0xff]
    %v1603 = vld [vmem:[#allocation9 + $0x188] sm:$0xff]
    %v1604 = vld [vmem:[#allocation9 + $0x190] sm:$0xff]
    %v1605 = vld [vmem:[#allocation9 + $0x198] sm:$0xff]
    %v1606 = vld [vmem:[#allocation9 + $0x1a0] sm:$0xff]
    %v1607 = vld [vmem:[#allocation9 + $0x1a8] sm:$0xff]
    %v1608 = vld [vmem:[#allocation9 + $0x1b0] sm:$0xff]
    %v1609 = vld [vmem:[#allocation9 + $0x1b8] sm:$0xff]
    %v1610 = vld [vmem:[#allocation9 + $0x1c0] sm:$0xff]
    %v1611 = vld [vmem:[#allocation9 + $0x1c8] sm:$0xff]
    %v1612 = vld [vmem:[#allocation9 + $0x1d0] sm:$0xff]
    %v1613 = vld [vmem:[#allocation9 + $0x1d8] sm:$0xff]
    %v1614 = vld [vmem:[#allocation9 + $0x1e0] sm:$0xff]
    %v1615 = vld [vmem:[#allocation9 + $0x1e8] sm:$0xff]
    %v1616 = vld [vmem:[#allocation9 + $0x1f0] sm:$0xff]
    %v1617 = vld [vmem:[#allocation9 + $0x1f8] sm:$0xff]
    %v1618 = vld [vmem:[#allocation9 + $0x200] sm:$0xff]
    %v1619 = vld [vmem:[#allocation9 + $0x208] sm:$0xff]
    %v1620 = vld [vmem:[#allocation9 + $0x210] sm:$0xff]
    %v1621 = vld [vmem:[#allocation9 + $0x218] sm:$0xff]
    %v1622 = vld [vmem:[#allocation9 + $0x220] sm:$0xff]
    %v1623 = vld [vmem:[#allocation9 + $0x228] sm:$0xff]
    %v1624 = vld [vmem:[#allocation9 + $0x230] sm:$0xff]
    %v1625 = vld [vmem:[#allocation9 + $0x238] sm:$0xff]
    %v1626 = vld [vmem:[#allocation9 + $0x240] sm:$0xff]
    %v1627 = vld [vmem:[#allocation9 + $0x248] sm:$0xff]
    %v1628 = vld [vmem:[#allocation9 + $0x250] sm:$0xff]
    %v1629 = vld [vmem:[#allocation9 + $0x258] sm:$0xff]
    %v1630 = vld [vmem:[#allocation9 + $0x260] sm:$0xff]
    %v1631 = vld [vmem:[#allocation9 + $0x268] sm:$0xff]
    %v1632 = vld [vmem:[#allocation9 + $0x270] sm:$0xff]
    %v1633 = vld [vmem:[#allocation9 + $0x278] sm:$0xff]
    %v1634 = vld [vmem:[#allocation9 + $0x280] sm:$0xff]
    %v1635 = vld [vmem:[#allocation9 + $0x288] sm:$0xff]
    %v1636 = vld [vmem:[#allocation9 + $0x290] sm:$0xff]
    %v1637 = vld [vmem:[#allocation9 + $0x298] sm:$0xff]
    %v1638 = vld [vmem:[#allocation9 + $0x2a0] sm:$0xff]
    %v1639 = vld [vmem:[#allocation9 + $0x2a8] sm:$0xff]
    %v1640 = vld [vmem:[#allocation9 + $0x2b0] sm:$0xff]
    %v1641 = vld [vmem:[#allocation9 + $0x2b8] sm:$0xff]
    %v1642 = vld [vmem:[#allocation9 + $0x2c0] sm:$0xff]
    %v1643 = vld [vmem:[#allocation9 + $0x2c8] sm:$0xff]
    %v1644 = vld [vmem:[#allocation9 + $0x2d0] sm:$0xff]
    %v1645 = vld [vmem:[#allocation9 + $0x2d8] sm:$0xff]
    %v1646 = vld [vmem:[#allocation9 + $0x2e0] sm:$0xff]
    %v1647 = vld [vmem:[#allocation9 + $0x2e8] sm:$0xff]
    %v1648 = vld [vmem:[#allocation9 + $0x2f0] sm:$0xff]
    %v1649 = vld [vmem:[#allocation9 + $0x2f8] sm:$0xff]
    %v1650 = vld [vmem:[#allocation9 + $0x300] sm:$0xff]
    %v1651 = vld [vmem:[#allocation9 + $0x308] sm:$0xff]
    %v1652 = vld [vmem:[#allocation9 + $0x310] sm:$0xff]
    %v1653 = vld [vmem:[#allocation9 + $0x318] sm:$0xff]
    %v1654 = vld [vmem:[#allocation9 + $0x320] sm:$0xff]
    %v1655 = vld [vmem:[#allocation9 + $0x328] sm:$0xff]
    %v1656 = vld [vmem:[#allocation9 + $0x330] sm:$0xff]
    %v1657 = vld [vmem:[#allocation9 + $0x338] sm:$0xff]
    %v1658 = vld [vmem:[#allocation9 + $0x340] sm:$0xff]
    %v1659 = vld [vmem:[#allocation9 + $0x348] sm:$0xff]
    %v1660 = vld [vmem:[#allocation9 + $0x350] sm:$0xff]
    %v1661 = vld [vmem:[#allocation9 + $0x358] sm:$0xff]
    %v1662 = vld [vmem:[#allocation9 + $0x360] sm:$0xff]
    %v1663 = vld [vmem:[#allocation9 + $0x368] sm:$0xff]
    %v1664 = vld [vmem:[#allocation9 + $0x370] sm:$0xff]
    %v1665 = vld [vmem:[#allocation9 + $0x378] sm:$0xff]
    %v1666 = vld [vmem:[#allocation9 + $0x380] sm:$0xff]
    %v1667 = vld [vmem:[#allocation9 + $0x388] sm:$0xff]
    %v1668 = vld [vmem:[#allocation9 + $0x390] sm:$0xff]
    %v1669 = vld [vmem:[#allocation9 + $0x398] sm:$0xff]
    %v1670 = vld [vmem:[#allocation9 + $0x3a0] sm:$0xff]
    %v1671 = vld [vmem:[#allocation9 + $0x3a8] sm:$0xff]
    %v1672 = vld [vmem:[#allocation9 + $0x3b0] sm:$0xff]
    %v1673 = vld [vmem:[#allocation9 + $0x3b8] sm:$0xff]
    %v1674 = vld [vmem:[#allocation9 + $0x3c0] sm:$0xff]
    %v1675 = vld [vmem:[#allocation9 + $0x3c8] sm:$0xff]
    %v1676 = vld [vmem:[#allocation9 + $0x3d0] sm:$0xff]
    %v1677 = vld [vmem:[#allocation9 + $0x3d8] sm:$0xff]
    %v1678 = vld [vmem:[#allocation9 + $0x3e0] sm:$0xff]
    %v1679 = vld [vmem:[#allocation9 + $0x3e8] sm:$0xff]
    %v1680 = vld [vmem:[#allocation9 + $0x3f0] sm:$0xff]
    %v1681 = vld [vmem:[#allocation9 + $0x3f8] sm:$0xff]
    %v1682 = vld [vmem:[%s21] sm:$0x3]
    %v1684 = vlaneseq
    %v1685 = vshrl.u32 %v1684, 7
    %v1686 = vsub.s32 0, %v1685
    %v1687 = vrot.slane %v1682, %v1686
    %v1688 = vlaneseq
    %v1689 = vshrl.u32 %v1688, 7
    %v1690 = vsub.s32 1, %v1689
    %v1691 = vrot.slane %v1682, %v1690
    %1694 = vmatprep.subr.mxu0 %v1555
    %1695 = vmatpush1.msra.mxu0 %v1554
    %1696 = vmatprep.subr.mxu0 %v1557
    %1697 = vmatpush1.msra.mxu0 %v1556
    %1698 = vmatprep.subr.mxu0 %v1559
    %1699 = vmatpush1.msra.mxu0 %v1558
    %1700 = vmatprep.subr.mxu0 %v1561
    %1701 = vmatpush1.msra.mxu0 %v1560
    %1702 = vmatprep.subr.mxu0 %v1563
    %1703 = vmatpush1.msra.mxu0 %v1562
    %1704 = vmatprep.subr.mxu0 %v1565
    %1705 = vmatpush1.msra.mxu0 %v1564
    %1706 = vmatprep.subr.mxu0 %v1567
    %1707 = vmatpush1.msra.mxu0 %v1566
    %1708 = vmatprep.subr.mxu0 %v1569
    %1709 = vmatpush1.msra.mxu0 %v1568
    %1710 = vmatprep.subr.mxu0 %v1571
    %1711 = vmatpush1.msra.mxu0 %v1570
    %1712 = vmatprep.subr.mxu0 %v1573
    %1713 = vmatpush1.msra.mxu0 %v1572
    %1714 = vmatprep.subr.mxu0 %v1575
    %1715 = vmatpush1.msra.mxu0 %v1574
    %1716 = vmatprep.subr.mxu0 %v1577
    %1717 = vmatpush1.msra.mxu0 %v1576
    %1718 = vmatprep.subr.mxu0 %v1579
    %1719 = vmatpush1.msra.mxu0 %v1578
    %1720 = vmatprep.subr.mxu0 %v1581
    %1721 = vmatpush1.msra.mxu0 %v1580
    %1722 = vmatprep.subr.mxu0 %v1583
    %1723 = vmatpush1.msra.mxu0 %v1582
    %1724 = vmatprep.subr.mxu0 %v1585
    %1725 = vmatpush1.msra.mxu0 %v1584
    %1726 = vmatprep.subr.mxu0 %v1587
    %1727 = vmatpush1.msra.mxu0 %v1586
    %1728 = vmatprep.subr.mxu0 %v1589
    %1729 = vmatpush1.msra.mxu0 %v1588
    %1730 = vmatprep.subr.mxu0 %v1591
    %1731 = vmatpush1.msra.mxu0 %v1590
    %1732 = vmatprep.subr.mxu0 %v1593
    %1733 = vmatpush1.msra.mxu0 %v1592
    %1734 = vmatprep.subr.mxu0 %v1595
    %1735 = vmatpush1.msra.mxu0 %v1594
    %1736 = vmatprep.subr.mxu0 %v1597
    %1737 = vmatpush1.msra.mxu0 %v1596
    %1738 = vmatprep.subr.mxu0 %v1599
    %1739 = vmatpush1.msra.mxu0 %v1598
    %1740 = vmatprep.subr.mxu0 %v1601
    %1741 = vmatpush1.msra.mxu0 %v1600
    %1742 = vmatprep.subr.mxu0 %v1603
    %1743 = vmatpush1.msra.mxu0 %v1602
    %1744 = vmatprep.subr.mxu0 %v1605
    %1745 = vmatpush1.msra.mxu0 %v1604
    %1746 = vmatprep.subr.mxu0 %v1607
    %1747 = vmatpush1.msra.mxu0 %v1606
    %1748 = vmatprep.subr.mxu0 %v1609
    %1749 = vmatpush1.msra.mxu0 %v1608
    %1750 = vmatprep.subr.mxu0 %v1611
    %1751 = vmatpush1.msra.mxu0 %v1610
    %1752 = vmatprep.subr.mxu0 %v1613
    %1753 = vmatpush1.msra.mxu0 %v1612
    %1754 = vmatprep.subr.mxu0 %v1615
    %1755 = vmatpush1.msra.mxu0 %v1614
    %1756 = vmatprep.subr.mxu0 %v1617
    %1757 = vmatpush1.msra.mxu0 %v1616
    %1758 = vmatprep.mubr.f32.mxu0 %v1551
    %1759 = vmatmul.mubr.f32.gmra.mrb[0].mxu0 %v1550
    %v1760 = vpop.f32.mrb[0].mxu0
    %v1761 = vadd.f32 %v1687, %v1760
    %v1762 = vpop.f32.mrb[0].mxu0
    %v1763 = vadd.f32 %v1691, %v1762
    %1764 = vdwg.mxu0
    %1765 = vmatprep.subr.mxu0 %v1619
    %1766 = vmatpush1.msra.mxu0 %v1618
    %1767 = vmatprep.subr.mxu0 %v1621
    %1768 = vmatpush1.msra.mxu0 %v1620
    %1769 = vmatprep.subr.mxu0 %v1623
    %1770 = vmatpush1.msra.mxu0 %v1622
    %1771 = vmatprep.subr.mxu0 %v1625
    %1772 = vmatpush1.msra.mxu0 %v1624
    %1773 = vmatprep.subr.mxu0 %v1627
    %1774 = vmatpush1.msra.mxu0 %v1626
    %1775 = vmatprep.subr.mxu0 %v1629
    %1776 = vmatpush1.msra.mxu0 %v1628
    %1777 = vmatprep.subr.mxu0 %v1631
    %1778 = vmatpush1.msra.mxu0 %v1630
    %1779 = vmatprep.subr.mxu0 %v1633
    %1780 = vmatpush1.msra.mxu0 %v1632
    %1781 = vmatprep.subr.mxu0 %v1635
    %1782 = vmatpush1.msra.mxu0 %v1634
    %1783 = vmatprep.subr.mxu0 %v1637
    %1784 = vmatpush1.msra.mxu0 %v1636
    %1785 = vmatprep.subr.mxu0 %v1639
    %1786 = vmatpush1.msra.mxu0 %v1638
    %1787 = vmatprep.subr.mxu0 %v1641
    %1788 = vmatpush1.msra.mxu0 %v1640
    %1789 = vmatprep.subr.mxu0 %v1643
    %1790 = vmatpush1.msra.mxu0 %v1642
    %1791 = vmatprep.subr.mxu0 %v1645
    %1792 = vmatpush1.msra.mxu0 %v1644
    %1793 = vmatprep.subr.mxu0 %v1647
    %1794 = vmatpush1.msra.mxu0 %v1646
    %1795 = vmatprep.subr.mxu0 %v1649
    %1796 = vmatpush1.msra.mxu0 %v1648
    %1797 = vmatprep.subr.mxu0 %v1651
    %1798 = vmatpush1.msra.mxu0 %v1650
    %1799 = vmatprep.subr.mxu0 %v1653
    %1800 = vmatpush1.msra.mxu0 %v1652
    %1801 = vmatprep.subr.mxu0 %v1655
    %1802 = vmatpush1.msra.mxu0 %v1654
    %1803 = vmatprep.subr.mxu0 %v1657
    %1804 = vmatpush1.msra.mxu0 %v1656
    %1805 = vmatprep.subr.mxu0 %v1659
    %1806 = vmatpush1.msra.mxu0 %v1658
    %1807 = vmatprep.subr.mxu0 %v1661
    %1808 = vmatpush1.msra.mxu0 %v1660
    %1809 = vmatprep.subr.mxu0 %v1663
    %1810 = vmatpush1.msra.mxu0 %v1662
    %1811 = vmatprep.subr.mxu0 %v1665
    %1812 = vmatpush1.msra.mxu0 %v1664
    %1813 = vmatprep.subr.mxu0 %v1667
    %1814 = vmatpush1.msra.mxu0 %v1666
    %1815 = vmatprep.subr.mxu0 %v1669
    %1816 = vmatpush1.msra.mxu0 %v1668
    %1817 = vmatprep.subr.mxu0 %v1671
    %1818 = vmatpush1.msra.mxu0 %v1670
    %1819 = vmatprep.subr.mxu0 %v1673
    %1820 = vmatpush1.msra.mxu0 %v1672
    %1821 = vmatprep.subr.mxu0 %v1675
    %1822 = vmatpush1.msra.mxu0 %v1674
    %1823 = vmatprep.subr.mxu0 %v1677
    %1824 = vmatpush1.msra.mxu0 %v1676
    %1825 = vmatprep.subr.mxu0 %v1679
    %1826 = vmatpush1.msra.mxu0 %v1678
    %1827 = vmatprep.subr.mxu0 %v1681
    %1828 = vmatpush1.msra.mxu0 %v1680
    %1829 = vmatprep.mubr.f32.mxu0 %v1553
    %1830 = vmatmul.mubr.f32.gmra.mrb[0].mxu0 %v1552
    %v1831 = vpop.f32.mrb[0].mxu0
    %v1832 = vadd.f32 %v1761, %v1831
    %v1833 = vpop.f32.mrb[0].mxu0
    %v1834 = vadd.f32 %v1763, %v1833
    %1835 = vdwg.mxu0
    %v1836 = vmax.f32 %v1832, 0.0
    %v1837 = vmax.f32 %v1834, 0.0
    %v1838 = vld [vmem:[%s22] sm:$0xff]
    %v1839 = vld [vmem:[%s22 + $0x8] sm:$0xff]
    %v1840 = vld [vmem:[%s22 + $0x10] sm:$0xff]
    %v1841 = vld [vmem:[%s22 + $0x18] sm:$0xff]
    %v1842 = vld [vmem:[%s22 + $0x20] sm:$0xff]
    %v1843 = vld [vmem:[%s22 + $0x28] sm:$0xff]
    %v1844 = vld [vmem:[%s22 + $0x30] sm:$0xff]
    %v1845 = vld [vmem:[%s22 + $0x38] sm:$0xff]
    %v1846 = vld [vmem:[%s22 + $0x40] sm:$0xff]
    %v1847 = vld [vmem:[%s22 + $0x48] sm:$0xff]
    %v1848 = vld [vmem:[%s22 + $0x50] sm:$0xff]
    %v1849 = vld [vmem:[%s22 + $0x58] sm:$0xff]
    %v1850 = vld [vmem:[%s22 + $0x60] sm:$0xff]
    %v1851 = vld [vmem:[%s22 + $0x68] sm:$0xff]
    %v1852 = vld [vmem:[%s22 + $0x70] sm:$0xff]
    %v1853 = vld [vmem:[%s22 + $0x78] sm:$0xff]
    %v1854 = vld [vmem:[%s22 + $0x80] sm:$0xff]
    %v1855 = vld [vmem:[%s22 + $0x88] sm:$0xff]
    %v1856 = vld [vmem:[%s22 + $0x90] sm:$0xff]
    %v1857 = vld [vmem:[%s22 + $0x98] sm:$0xff]
    %v1858 = vld [vmem:[%s22 + $0xa0] sm:$0xff]
    %v1859 = vld [vmem:[%s22 + $0xa8] sm:$0xff]
    %v1860 = vld [vmem:[%s22 + $0xb0] sm:$0xff]
    %v1861 = vld [vmem:[%s22 + $0xb8] sm:$0xff]
    %v1862 = vld [vmem:[%s22 + $0xc0] sm:$0xff]
    %v1863 = vld [vmem:[%s22 + $0xc8] sm:$0xff]
    %v1864 = vld [vmem:[%s22 + $0xd0] sm:$0xff]
    %v1865 = vld [vmem:[%s22 + $0xd8] sm:$0xff]
    %v1866 = vld [vmem:[%s22 + $0xe0] sm:$0xff]
    %v1867 = vld [vmem:[%s22 + $0xe8] sm:$0xff]
    %v1868 = vld [vmem:[%s22 + $0xf0] sm:$0xff]
    %v1869 = vld [vmem:[%s22 + $0xf8] sm:$0xff]
    %v1870 = vld [vmem:[%s23] sm:$0x1]
    %v1872 = vlaneseq
    %v1873 = vshrl.u32 %v1872, 7
    %v1874 = vsub.s32 0, %v1873
    %v1875 = vrot.slane %v1870, %v1874
    %1877 = vmatprep.subr.mxu0 0.0
    %1878 = vmatpush1.msra.mxu0 %v1838
    %1879 = vmatprep.subr.mxu0 0.0
    %1880 = vmatpush1.msra.mxu0 %v1839
    %1881 = vmatprep.subr.mxu0 0.0
    %1882 = vmatpush1.msra.mxu0 %v1840
    %1883 = vmatprep.subr.mxu0 0.0
    %1884 = vmatpush1.msra.mxu0 %v1841
    %1885 = vmatprep.subr.mxu0 0.0
    %1886 = vmatpush1.msra.mxu0 %v1842
    %1887 = vmatprep.subr.mxu0 0.0
    %1888 = vmatpush1.msra.mxu0 %v1843
    %1889 = vmatprep.subr.mxu0 0.0
    %1890 = vmatpush1.msra.mxu0 %v1844
    %1891 = vmatprep.subr.mxu0 0.0
    %1892 = vmatpush1.msra.mxu0 %v1845
    %1893 = vmatprep.subr.mxu0 0.0
    %1894 = vmatpush1.msra.mxu0 %v1846
    %1895 = vmatprep.subr.mxu0 0.0
    %1896 = vmatpush1.msra.mxu0 %v1847
    %1897 = vmatprep.subr.mxu0 0.0
    %1898 = vmatpush1.msra.mxu0 %v1848
    %1899 = vmatprep.subr.mxu0 0.0
    %1900 = vmatpush1.msra.mxu0 %v1849
    %1901 = vmatprep.subr.mxu0 0.0
    %1902 = vmatpush1.msra.mxu0 %v1850
    %1903 = vmatprep.subr.mxu0 0.0
    %1904 = vmatpush1.msra.mxu0 %v1851
    %1905 = vmatprep.subr.mxu0 0.0
    %1906 = vmatpush1.msra.mxu0 %v1852
    %1907 = vmatprep.subr.mxu0 0.0
    %1908 = vmatpush1.msra.mxu0 %v1853
    %1909 = vmatprep.subr.mxu0 0.0
    %1910 = vmatpush1.msra.mxu0 %v1854
    %1911 = vmatprep.subr.mxu0 0.0
    %1912 = vmatpush1.msra.mxu0 %v1855
    %1913 = vmatprep.subr.mxu0 0.0
    %1914 = vmatpush1.msra.mxu0 %v1856
    %1915 = vmatprep.subr.mxu0 0.0
    %1916 = vmatpush1.msra.mxu0 %v1857
    %1917 = vmatprep.subr.mxu0 0.0
    %1918 = vmatpush1.msra.mxu0 %v1858
    %1919 = vmatprep.subr.mxu0 0.0
    %1920 = vmatpush1.msra.mxu0 %v1859
    %1921 = vmatprep.subr.mxu0 0.0
    %1922 = vmatpush1.msra.mxu0 %v1860
    %1923 = vmatprep.subr.mxu0 0.0
    %1924 = vmatpush1.msra.mxu0 %v1861
    %1925 = vmatprep.subr.mxu0 0.0
    %1926 = vmatpush1.msra.mxu0 %v1862
    %1927 = vmatprep.subr.mxu0 0.0
    %1928 = vmatpush1.msra.mxu0 %v1863
    %1929 = vmatprep.subr.mxu0 0.0
    %1930 = vmatpush1.msra.mxu0 %v1864
    %1931 = vmatprep.subr.mxu0 0.0
    %1932 = vmatpush1.msra.mxu0 %v1865
    %1933 = vmatprep.subr.mxu0 0.0
    %1934 = vmatpush1.msra.mxu0 %v1866
    %1935 = vmatprep.subr.mxu0 0.0
    %1936 = vmatpush1.msra.mxu0 %v1867
    %1937 = vmatprep.subr.mxu0 0.0
    %1938 = vmatpush1.msra.mxu0 %v1868
    %1939 = vmatprep.subr.mxu0 0.0
    %1940 = vmatpush1.msra.mxu0 %v1869
    %1941 = vmatprep.mubr.f32.mxu0 %v1837
    %1942 = vmatmul.mubr.f32.gmra.mrb[0].mxu0 %v1836
    %v1943 = vpop.f32.mrb[0].mxu0
    %v1944 = vadd.f32 %v1875, %v1943
    %v1945 = vpop.f32.mrb[0].mxu0
    %1946 = vdwg.mxu0
    %v1947 = vmax.f32 %v1944, 0.0
    %v1948 = vld [vmem:[%s24] sm:$0x1]
    %v1950 = vlaneseq
    %v1951 = vshrl.u32 %v1950, 7
    %v1952 = vsub.s32 0, %v1951
    %v1953 = vrot.slane %v1948, %v1952
    %v1955 = vmul.f32 %v1947, %v1953
    %v1956 = vsel %vm1043, %v1955, 0.0
    %1957 = vadd.xlane.f32.xlu0 %v1956
    %v1958 = vpop.xlane.xlu0 %1957
    %s1959 = sld [smem:[#allocation3]]
    %v1960 = vstv %s1959
    %v1961 = vadd.f32 %v1958, %v1960
    %vm1962 = vcmask 7168
    %1963 = vst.msk [vmem:[%s26] sm:$0xff] %vm1962, %v1961
    // Predicated region
    $region122: #{tpu_custom_call.1} parent=1 // pred_check
      _
    $region123: #{tpu_custom_call.1} parent=1 // pred_check_branch
      %1965 = sbr.rel (0) target = $region125
    $region124: #{tpu_custom_call.1} parent=1 // pred_region
      _
    $region125: #{tpu_custom_call.1} parent=1 // pred_fallthru
      _
    // Predicated region
    $region126: #{tpu_custom_call.1} parent=1 // pred_check
      _
    $region127: #{tpu_custom_call.1} parent=1 // pred_check_branch
      %1967 = sbr.rel (0) target = $region129
    $region128: #{tpu_custom_call.1} parent=1 // pred_region
      _
    $region129: #{tpu_custom_call.1} parent=1 // pred_fallthru
      _
    %1968 = vsyncpa [#allocation5], 1
    %1969 = vsyncpa [#allocation7], 1
    %1970 = vsyncpa [#allocation10], 1

</llo_original>
